<compile_context>
chip_gen: v6e
topology: v6e:2x2x1
jax: 0.10.0
libtpu: 0.0.40
codegen_flags: <defaults>
</compile_context>

<pallas_src>
import jax
import jax.numpy as jnp
from jax.experimental import pallas as pl
from jax.experimental.pallas import tpu as pltpu

# ---------------- configuration (args of MyBILSTM) ----------------
EMBED_NUM = 50          # args.embed_num
EMBED_DIM = 32          # args.embed_dim == args.input_size
HIDDEN = 32             # args.hidden_size
CLASS_NUM = 5           # args.class_num
BATCH = 2
SEQ = 8
HEAD_PAD = 128          # lane-dense padded class dim


# ---------------- parameter init (deterministic, synthetic) ----------------
def init_params(key):
    ks = jax.random.split(key, 8)
    scale = 0.1
    # per-direction gate weights stacked as (4, E+H, H) in gate order [f, i, c, o],
    # stored (in, out) so z @ W  == PyTorch's  Linear(cat([x, h]))  (x @ W.T).
    return dict(
        embed=jax.random.normal(ks[0], (EMBED_NUM, EMBED_DIM), jnp.float32) * scale,
        w_fwd=jax.random.normal(ks[1], (4, EMBED_DIM + HIDDEN, HIDDEN), jnp.float32) * scale,
        b_fwd=jax.random.normal(ks[2], (4, 1, HIDDEN), jnp.float32) * scale,
        w_bwd=jax.random.normal(ks[3], (4, EMBED_DIM + HIDDEN, HIDDEN), jnp.float32) * scale,
        b_bwd=jax.random.normal(ks[4], (4, 1, HIDDEN), jnp.float32) * scale,
        w_out=jax.random.normal(ks[5], (HIDDEN, CLASS_NUM), jnp.float32) * scale,
        b_out=jax.random.normal(ks[6], (1, CLASS_NUM), jnp.float32) * scale,
    )


def _fuse_gate_weights(w, b):
    """(4, E+H, H) gate order [f,i,c,o] -> lane-dense (E+H, 4H) and (1, 4H)."""
    eh, h = w.shape[1], w.shape[2]
    w4 = jnp.transpose(w, (1, 0, 2)).reshape(eh, 4 * h)   # cols [f|i|c|o]
    b4 = b.reshape(1, 4 * h)
    return w4, b4


def prepare_kernel_params(params):
    """One-time (per weight set) layout prep: fused weights, projected embed
    table, lane-dense padded head.  Nothing here runs per forward call."""
    E = params["embed"].shape[1]
    H = params["w_fwd"].shape[-1]
    C = params["w_out"].shape[-1]

    wf, bf = _fuse_gate_weights(params["w_fwd"], params["b_fwd"])
    wb, bb = _fuse_gate_weights(params["w_bwd"], params["b_bwd"])
    w_all = jnp.concatenate([wf, wb], axis=1)      # (E+H, 8H): [fwd f|i|c|o | bwd f|i|c|o]
    b_all = jnp.concatenate([bf, bb], axis=1)      # (1, 8H)

    w_x = w_all[:E]                                # (E, 8H) time-invariant part
    w_h = w_all[E:]                                # (H, 8H) recurrent part
    # Embedding + input projection fused: per-token gate pre-activation rows.
    proj_table = (params["embed"] @ w_x + b_all).astype(jnp.float32)   # (V, 8H)
    # bf16 operand for the serial recurrence matmul (f32 accumulate in-kernel).
    w_h = w_h.astype(jnp.bfloat16)

    # Lane-dense head: pad class dim to 128 lanes (zeros beyond C).
    w_out = jnp.zeros((H, HEAD_PAD), jnp.float32).at[:, :C].set(params["w_out"])
    b_out = jnp.zeros((1, HEAD_PAD), jnp.float32).at[:, :C].set(params["b_out"])
    return dict(proj=proj_table, w_h=w_h, w_out=w_out, b_out=b_out)


# ---------------- fused Pallas kernel ----------------
def _bilstm_fused_kernel(tok_ref, proj_ref, wh_ref, wo_ref, bo_ref, out_ref):
    B, T = tok_ref.shape              # tokens (B, S) in SMEM
    H = wh_ref.shape[0]
    H4 = 4 * H

    wh = wh_ref[...]                  # (H, 8H) bf16, resident for all steps

    # ---- in-kernel embedding gather of the pre-projected table --------------
    # gx[t] = x[t] @ W_x + b for both directions' gate columns, shape (B, 8H).
    gx = []
    for t in range(T):
        rows = [proj_ref[pl.ds(tok_ref[b, t], 1), :] for b in range(B)]
        gx.append(jnp.concatenate(rows, axis=0))
    # Pair fwd time t with bwd time T-1-t; all of this is off the serial chain.
    gx_pair = [jnp.concatenate([gx[t], gx[T - 1 - t]], axis=0) for t in range(T)]

    h_f = jnp.zeros((B, H), jnp.float32)
    h_b = jnp.zeros((B, H), jnp.float32)
    o_fwd, o_bwd, done = {}, {}, set()
    pooled = None

    # Fully unrolled time loop; both directions + all 4 gates share ONE
    # (2B, H) @ (H, 8H) recurrence-only matmul per step (bf16 operands).
    for t in range(T):
        hz = jnp.concatenate([h_f, h_b], axis=0).astype(jnp.bfloat16)   # (2B, H)
        g = gx_pair[t] + jnp.dot(hz, wh, preferred_element_type=jnp.float32)  # (2B, 8H)

        # Full-width transcendentals (EUP slot), then 32-lane gate extraction.
        sg = jax.nn.sigmoid(g)
        tg = jnp.tanh(g)

        # fwd direction: rows [:B], gate columns [f|i|c|o] at lanes [0, 4H)
        f, i = sg[:B, 0:H], sg[:B, H:2 * H]
        c, o = tg[:B, 2 * H:3 * H], sg[:B, 3 * H:H4]
        h_f = o * jnp.tanh((f + i) * c)       # ct = f*c~ + i*c~ (PyTorch quirk)

        # bwd direction: rows [B:], gate columns at lanes [4H, 8H)
        f, i = sg[B:, H4:H4 + H], sg[B:, H4 + H:H4 + 2 * H]
        c, o = tg[B:, H4 + 2 * H:H4 + 3 * H], sg[B:, H4 + 3 * H:H4 + 4 * H]
        h_b = o * jnp.tanh((f + i) * c)

        o_fwd[t] = h_f
        o_bwd[T - 1 - t] = h_b                # time-aligned backward output

        # Streamed max-pool: fold tanh(h_fwd[s]*h_bwd[s]) as soon as both exist,
        # so only the first T/2 outputs of each direction stay live.
        for s in ((t,) if t == T - 1 - t else (t, T - 1 - t)):
            if s in o_fwd and s in o_bwd and s not in done:
                v = jnp.tanh(o_fwd[s] * o_bwd[s])
                pooled = v if pooled is None else jnp.maximum(pooled, v)
                done.add(s)

    # Lane-dense linear head -> (B, 128); the only HBM write of the kernel.
    out_ref[...] = (jnp.dot(pooled, wo_ref[...], preferred_element_type=jnp.float32)
                    + bo_ref[...])


# ---------------- wrapper ----------------
def bilstm_forward(tokens, kp):
    """tokens: (B, S) int32; kp: output of prepare_kernel_params."""
    B, S = tokens.shape
    out_pad = pl.pallas_call(
        _bilstm_fused_kernel,
        out_shape=jax.ShapeDtypeStruct((B, HEAD_PAD), jnp.float32),
        in_specs=[
            pl.BlockSpec(memory_space=pltpu.MemorySpace.SMEM),   # token ids
            pl.BlockSpec(memory_space=pltpu.MemorySpace.VMEM),   # proj table (V, 8H)
            pl.BlockSpec(memory_space=pltpu.MemorySpace.VMEM),   # W_h (H, 8H) bf16
            pl.BlockSpec(memory_space=pltpu.MemorySpace.VMEM),   # w_out (H, 128)
            pl.BlockSpec(memory_space=pltpu.MemorySpace.VMEM),   # b_out (1, 128)
        ],
        out_specs=pl.BlockSpec(memory_space=pltpu.MemorySpace.VMEM),
    )(tokens, kp["proj"], kp["w_h"], kp["w_out"], kp["b_out"])
    return out_pad[:, :CLASS_NUM]


# ---------------- pure-JAX reference (for sanity check) ----------------
def bilstm_reference(x_tokens, params):
    x = params["embed"][x_tokens]
    x = jnp.transpose(x, (1, 0, 2)).astype(jnp.float32)     # (T, B, E)
    T, B, E = x.shape
    H = params["w_fwd"].shape[-1]

    def cell(x_t, h, w, b):
        z = jnp.concatenate([x_t, h], axis=1)
        g = lambda k: z @ w[k] + b[k]
        ft, it = jax.nn.sigmoid(g(0)), jax.nn.sigmoid(g(1))
        c_tilde, ot = jnp.tanh(g(2)), jax.nn.sigmoid(g(3))
        ct = ft * c_tilde + it * c_tilde
        return ot * jnp.tanh(ct), ct

    h = jnp.zeros((B, H)); c = jnp.zeros((B, H)); o1 = []
    for t in range(T):
        h, c = cell(x[t], h, params["w_fwd"], params["b_fwd"])
        o1.append(h)
    h = jnp.zeros((B, H)); c = jnp.zeros((B, H)); o2 = [None] * T
    for t in range(T - 1, -1, -1):
        h, c = cell(x[t], h, params["w_bwd"], params["b_bwd"])
        o2[t] = h
    o1 = jnp.stack(o1); o2 = jnp.stack(o2)
    pooled = jnp.max(jnp.tanh(o1 * o2), axis=0)
    return pooled @ params["w_out"] + params["b_out"]


if __name__ == "__main__":
    key = jax.random.PRNGKey(0)
    k_tok, k_par = jax.random.split(key)
    tokens = jax.random.randint(k_tok, (BATCH, SEQ), 0, EMBED_NUM, dtype=jnp.int32)
    params = init_params(k_par)

    # One-time weight-layout prep (fusion, embed@W_x table, head padding).
    kparams = prepare_kernel_params(params)

    fwd = jax.jit(bilstm_forward)
    out = jax.block_until_ready(fwd(tokens, kparams))
    assert out.shape == (BATCH, CLASS_NUM)

    ref = jax.block_until_ready(bilstm_reference(tokens, params))
    # bf16 operands on the recurrence matmul -> slightly relaxed tolerance.
    assert jnp.allclose(out, ref, atol=2e-3, rtol=2e-3), (out, ref)

    # TODO(synk): nn.Dropout (embed / rnn) is identity in inference mode; no
    # train-mode dropout is implemented in the kernel.
    print("KERNEL_OK")
</pallas_src>

<mosaic_0001>
module attributes {stable_mosaic.version = 11 : i64} {
  func.func @_bilstm_fused_kernel(%arg0: memref<2x8xi32, #tpu.memory_space<smem>>, %arg1: memref<50x256xf32, #tpu.memory_space<vmem>>, %arg2: memref<32x256xbf16, #tpu.memory_space<vmem>>, %arg3: memref<32x128xf32, #tpu.memory_space<vmem>>, %arg4: memref<1x128xf32, #tpu.memory_space<vmem>>, %arg5: memref<2x128xf32, #tpu.memory_space<vmem>>) attributes {dimension_semantics = [], scalar_prefetch = 0 : i64, scratch_operands = 0 : i64, tpu.core_type = #tpu.core_type<tc>} {
    %c0 = arith.constant 0 : index
    %c0_0 = arith.constant 0 : index
    %0 = vector.load %arg2[%c0, %c0_0] : memref<32x256xbf16, #tpu.memory_space<vmem>>, vector<32x256xbf16>
    %c0_1 = arith.constant 0 : index
    %c0_2 = arith.constant 0 : index
    %1 = memref.load %arg0[%c0_1, %c0_2] : memref<2x8xi32, #tpu.memory_space<smem>>
    %2 = arith.index_cast %1 : i32 to index
    %c0_3 = arith.constant 0 : index
    %3 = vector.load %arg1[%2, %c0_3] : memref<50x256xf32, #tpu.memory_space<vmem>>, vector<1x256xf32>
    %c1 = arith.constant 1 : index
    %c0_4 = arith.constant 0 : index
    %4 = memref.load %arg0[%c1, %c0_4] : memref<2x8xi32, #tpu.memory_space<smem>>
    %5 = arith.index_cast %4 : i32 to index
    %c0_5 = arith.constant 0 : index
    %6 = vector.load %arg1[%5, %c0_5] : memref<50x256xf32, #tpu.memory_space<vmem>>, vector<1x256xf32>
    %7 = tpu.concatenate %3, %6 in 0 : vector<1x256xf32>, vector<1x256xf32> -> vector<2x256xf32>
    %c0_6 = arith.constant 0 : index
    %c1_7 = arith.constant 1 : index
    %8 = memref.load %arg0[%c0_6, %c1_7] : memref<2x8xi32, #tpu.memory_space<smem>>
    %9 = arith.index_cast %8 : i32 to index
    %c0_8 = arith.constant 0 : index
    %10 = vector.load %arg1[%9, %c0_8] : memref<50x256xf32, #tpu.memory_space<vmem>>, vector<1x256xf32>
    %c1_9 = arith.constant 1 : index
    %c1_10 = arith.constant 1 : index
    %11 = memref.load %arg0[%c1_9, %c1_10] : memref<2x8xi32, #tpu.memory_space<smem>>
    %12 = arith.index_cast %11 : i32 to index
    %c0_11 = arith.constant 0 : index
    %13 = vector.load %arg1[%12, %c0_11] : memref<50x256xf32, #tpu.memory_space<vmem>>, vector<1x256xf32>
    %14 = tpu.concatenate %10, %13 in 0 : vector<1x256xf32>, vector<1x256xf32> -> vector<2x256xf32>
    %c0_12 = arith.constant 0 : index
    %c2 = arith.constant 2 : index
    %15 = memref.load %arg0[%c0_12, %c2] : memref<2x8xi32, #tpu.memory_space<smem>>
    %16 = arith.index_cast %15 : i32 to index
    %c0_13 = arith.constant 0 : index
    %17 = vector.load %arg1[%16, %c0_13] : memref<50x256xf32, #tpu.memory_space<vmem>>, vector<1x256xf32>
    %c1_14 = arith.constant 1 : index
    %c2_15 = arith.constant 2 : index
    %18 = memref.load %arg0[%c1_14, %c2_15] : memref<2x8xi32, #tpu.memory_space<smem>>
    %19 = arith.index_cast %18 : i32 to index
    %c0_16 = arith.constant 0 : index
    %20 = vector.load %arg1[%19, %c0_16] : memref<50x256xf32, #tpu.memory_space<vmem>>, vector<1x256xf32>
    %21 = tpu.concatenate %17, %20 in 0 : vector<1x256xf32>, vector<1x256xf32> -> vector<2x256xf32>
    %c0_17 = arith.constant 0 : index
    %c3 = arith.constant 3 : index
    %22 = memref.load %arg0[%c0_17, %c3] : memref<2x8xi32, #tpu.memory_space<smem>>
    %23 = arith.index_cast %22 : i32 to index
    %c0_18 = arith.constant 0 : index
    %24 = vector.load %arg1[%23, %c0_18] : memref<50x256xf32, #tpu.memory_space<vmem>>, vector<1x256xf32>
    %c1_19 = arith.constant 1 : index
    %c3_20 = arith.constant 3 : index
    %25 = memref.load %arg0[%c1_19, %c3_20] : memref<2x8xi32, #tpu.memory_space<smem>>
    %26 = arith.index_cast %25 : i32 to index
    %c0_21 = arith.constant 0 : index
    %27 = vector.load %arg1[%26, %c0_21] : memref<50x256xf32, #tpu.memory_space<vmem>>, vector<1x256xf32>
    %28 = tpu.concatenate %24, %27 in 0 : vector<1x256xf32>, vector<1x256xf32> -> vector<2x256xf32>
    %c0_22 = arith.constant 0 : index
    %c4 = arith.constant 4 : index
    %29 = memref.load %arg0[%c0_22, %c4] : memref<2x8xi32, #tpu.memory_space<smem>>
    %30 = arith.index_cast %29 : i32 to index
    %c0_23 = arith.constant 0 : index
    %31 = vector.load %arg1[%30, %c0_23] : memref<50x256xf32, #tpu.memory_space<vmem>>, vector<1x256xf32>
    %c1_24 = arith.constant 1 : index
    %c4_25 = arith.constant 4 : index
    %32 = memref.load %arg0[%c1_24, %c4_25] : memref<2x8xi32, #tpu.memory_space<smem>>
    %33 = arith.index_cast %32 : i32 to index
    %c0_26 = arith.constant 0 : index
    %34 = vector.load %arg1[%33, %c0_26] : memref<50x256xf32, #tpu.memory_space<vmem>>, vector<1x256xf32>
    %35 = tpu.concatenate %31, %34 in 0 : vector<1x256xf32>, vector<1x256xf32> -> vector<2x256xf32>
    %c0_27 = arith.constant 0 : index
    %c5 = arith.constant 5 : index
    %36 = memref.load %arg0[%c0_27, %c5] : memref<2x8xi32, #tpu.memory_space<smem>>
    %37 = arith.index_cast %36 : i32 to index
    %c0_28 = arith.constant 0 : index
    %38 = vector.load %arg1[%37, %c0_28] : memref<50x256xf32, #tpu.memory_space<vmem>>, vector<1x256xf32>
    %c1_29 = arith.constant 1 : index
    %c5_30 = arith.constant 5 : index
    %39 = memref.load %arg0[%c1_29, %c5_30] : memref<2x8xi32, #tpu.memory_space<smem>>
    %40 = arith.index_cast %39 : i32 to index
    %c0_31 = arith.constant 0 : index
    %41 = vector.load %arg1[%40, %c0_31] : memref<50x256xf32, #tpu.memory_space<vmem>>, vector<1x256xf32>
    %42 = tpu.concatenate %38, %41 in 0 : vector<1x256xf32>, vector<1x256xf32> -> vector<2x256xf32>
    %c0_32 = arith.constant 0 : index
    %c6 = arith.constant 6 : index
    %43 = memref.load %arg0[%c0_32, %c6] : memref<2x8xi32, #tpu.memory_space<smem>>
    %44 = arith.index_cast %43 : i32 to index
    %c0_33 = arith.constant 0 : index
    %45 = vector.load %arg1[%44, %c0_33] : memref<50x256xf32, #tpu.memory_space<vmem>>, vector<1x256xf32>
    %c1_34 = arith.constant 1 : index
    %c6_35 = arith.constant 6 : index
    %46 = memref.load %arg0[%c1_34, %c6_35] : memref<2x8xi32, #tpu.memory_space<smem>>
    %47 = arith.index_cast %46 : i32 to index
    %c0_36 = arith.constant 0 : index
    %48 = vector.load %arg1[%47, %c0_36] : memref<50x256xf32, #tpu.memory_space<vmem>>, vector<1x256xf32>
    %49 = tpu.concatenate %45, %48 in 0 : vector<1x256xf32>, vector<1x256xf32> -> vector<2x256xf32>
    %c0_37 = arith.constant 0 : index
    %c7 = arith.constant 7 : index
    %50 = memref.load %arg0[%c0_37, %c7] : memref<2x8xi32, #tpu.memory_space<smem>>
    %51 = arith.index_cast %50 : i32 to index
    %c0_38 = arith.constant 0 : index
    %52 = vector.load %arg1[%51, %c0_38] : memref<50x256xf32, #tpu.memory_space<vmem>>, vector<1x256xf32>
    %c1_39 = arith.constant 1 : index
    %c7_40 = arith.constant 7 : index
    %53 = memref.load %arg0[%c1_39, %c7_40] : memref<2x8xi32, #tpu.memory_space<smem>>
    %54 = arith.index_cast %53 : i32 to index
    %c0_41 = arith.constant 0 : index
    %55 = vector.load %arg1[%54, %c0_41] : memref<50x256xf32, #tpu.memory_space<vmem>>, vector<1x256xf32>
    %56 = tpu.concatenate %52, %55 in 0 : vector<1x256xf32>, vector<1x256xf32> -> vector<2x256xf32>
    %57 = tpu.concatenate %7, %56 in 0 : vector<2x256xf32>, vector<2x256xf32> -> vector<4x256xf32>
    %58 = tpu.concatenate %14, %49 in 0 : vector<2x256xf32>, vector<2x256xf32> -> vector<4x256xf32>
    %59 = tpu.concatenate %21, %42 in 0 : vector<2x256xf32>, vector<2x256xf32> -> vector<4x256xf32>
    %60 = tpu.concatenate %28, %35 in 0 : vector<2x256xf32>, vector<2x256xf32> -> vector<4x256xf32>
    %61 = tpu.concatenate %35, %28 in 0 : vector<2x256xf32>, vector<2x256xf32> -> vector<4x256xf32>
    %62 = tpu.concatenate %42, %21 in 0 : vector<2x256xf32>, vector<2x256xf32> -> vector<4x256xf32>
    %63 = tpu.concatenate %49, %14 in 0 : vector<2x256xf32>, vector<2x256xf32> -> vector<4x256xf32>
    %64 = tpu.concatenate %56, %7 in 0 : vector<2x256xf32>, vector<2x256xf32> -> vector<4x256xf32>
    %cst = arith.constant 0.000000e+00 : f32
    %65 = vector.broadcast %cst : f32 to vector<2x32xf32>
    %cst_42 = arith.constant 0.000000e+00 : f32
    %66 = vector.broadcast %cst_42 : f32 to vector<2x32xf32>
    %67 = tpu.concatenate %65, %66 in 0 : vector<2x32xf32>, vector<2x32xf32> -> vector<4x32xf32>
    %68 = arith.truncf %67 : vector<4x32xf32> to vector<4x32xbf16>
    %cst_43 = arith.constant dense<0.000000e+00> : vector<4x256xf32>
    %69 = tpu.matmul %68, %0, %cst_43 {dimension_numbers = #tpu.dot_dimension_numbers<[1], [0], [0], [1], [0, 0, 1, 1], [], []>} : vector<4x32xbf16>, vector<32x256xbf16>, vector<4x256xf32> -> vector<4x256xf32>
    %70 = arith.addf %57, %69 : vector<4x256xf32>
    %71 = arith.negf %70 : vector<4x256xf32>
    %72 = math.exp %71 : vector<4x256xf32>
    %cst_44 = arith.constant 1.000000e+00 : f32
    %73 = vector.broadcast %cst_44 : f32 to vector<4x256xf32>
    %74 = arith.addf %73, %72 : vector<4x256xf32>
    %75 = arith.divf %73, %74 : vector<4x256xf32>
    %76 = math.tanh %70 : vector<4x256xf32>
    %77 = vector.extract_strided_slice %75 {offsets = [0, 0], sizes = [2, 32], strides = [1, 1]} : vector<4x256xf32> to vector<2x32xf32>
    %78 = vector.extract_strided_slice %75 {offsets = [0, 32], sizes = [2, 32], strides = [1, 1]} : vector<4x256xf32> to vector<2x32xf32>
    %79 = vector.extract_strided_slice %76 {offsets = [0, 64], sizes = [2, 32], strides = [1, 1]} : vector<4x256xf32> to vector<2x32xf32>
    %80 = vector.extract_strided_slice %75 {offsets = [0, 96], sizes = [2, 32], strides = [1, 1]} : vector<4x256xf32> to vector<2x32xf32>
    %81 = arith.addf %77, %78 : vector<2x32xf32>
    %82 = arith.mulf %81, %79 : vector<2x32xf32>
    %83 = math.tanh %82 : vector<2x32xf32>
    %84 = arith.mulf %80, %83 : vector<2x32xf32>
    %85 = vector.extract_strided_slice %75 {offsets = [2, 128], sizes = [2, 32], strides = [1, 1]} : vector<4x256xf32> to vector<2x32xf32>
    %86 = vector.extract_strided_slice %75 {offsets = [2, 160], sizes = [2, 32], strides = [1, 1]} : vector<4x256xf32> to vector<2x32xf32>
    %87 = vector.extract_strided_slice %76 {offsets = [2, 192], sizes = [2, 32], strides = [1, 1]} : vector<4x256xf32> to vector<2x32xf32>
    %88 = vector.extract_strided_slice %75 {offsets = [2, 224], sizes = [2, 32], strides = [1, 1]} : vector<4x256xf32> to vector<2x32xf32>
    %89 = arith.addf %85, %86 : vector<2x32xf32>
    %90 = arith.mulf %89, %87 : vector<2x32xf32>
    %91 = math.tanh %90 : vector<2x32xf32>
    %92 = arith.mulf %88, %91 : vector<2x32xf32>
    %93 = tpu.concatenate %84, %92 in 0 : vector<2x32xf32>, vector<2x32xf32> -> vector<4x32xf32>
    %94 = arith.truncf %93 : vector<4x32xf32> to vector<4x32xbf16>
    %cst_45 = arith.constant dense<0.000000e+00> : vector<4x256xf32>
    %95 = tpu.matmul %94, %0, %cst_45 {dimension_numbers = #tpu.dot_dimension_numbers<[1], [0], [0], [1], [0, 0, 1, 1], [], []>} : vector<4x32xbf16>, vector<32x256xbf16>, vector<4x256xf32> -> vector<4x256xf32>
    %96 = arith.addf %58, %95 : vector<4x256xf32>
    %97 = arith.negf %96 : vector<4x256xf32>
    %98 = math.exp %97 : vector<4x256xf32>
    %cst_46 = arith.constant 1.000000e+00 : f32
    %99 = vector.broadcast %cst_46 : f32 to vector<4x256xf32>
    %100 = arith.addf %99, %98 : vector<4x256xf32>
    %101 = arith.divf %99, %100 : vector<4x256xf32>
    %102 = math.tanh %96 : vector<4x256xf32>
    %103 = vector.extract_strided_slice %101 {offsets = [0, 0], sizes = [2, 32], strides = [1, 1]} : vector<4x256xf32> to vector<2x32xf32>
    %104 = vector.extract_strided_slice %101 {offsets = [0, 32], sizes = [2, 32], strides = [1, 1]} : vector<4x256xf32> to vector<2x32xf32>
    %105 = vector.extract_strided_slice %102 {offsets = [0, 64], sizes = [2, 32], strides = [1, 1]} : vector<4x256xf32> to vector<2x32xf32>
    %106 = vector.extract_strided_slice %101 {offsets = [0, 96], sizes = [2, 32], strides = [1, 1]} : vector<4x256xf32> to vector<2x32xf32>
    %107 = arith.addf %103, %104 : vector<2x32xf32>
    %108 = arith.mulf %107, %105 : vector<2x32xf32>
    %109 = math.tanh %108 : vector<2x32xf32>
    %110 = arith.mulf %106, %109 : vector<2x32xf32>
    %111 = vector.extract_strided_slice %101 {offsets = [2, 128], sizes = [2, 32], strides = [1, 1]} : vector<4x256xf32> to vector<2x32xf32>
    %112 = vector.extract_strided_slice %101 {offsets = [2, 160], sizes = [2, 32], strides = [1, 1]} : vector<4x256xf32> to vector<2x32xf32>
    %113 = vector.extract_strided_slice %102 {offsets = [2, 192], sizes = [2, 32], strides = [1, 1]} : vector<4x256xf32> to vector<2x32xf32>
    %114 = vector.extract_strided_slice %101 {offsets = [2, 224], sizes = [2, 32], strides = [1, 1]} : vector<4x256xf32> to vector<2x32xf32>
    %115 = arith.addf %111, %112 : vector<2x32xf32>
    %116 = arith.mulf %115, %113 : vector<2x32xf32>
    %117 = math.tanh %116 : vector<2x32xf32>
    %118 = arith.mulf %114, %117 : vector<2x32xf32>
    %119 = tpu.concatenate %110, %118 in 0 : vector<2x32xf32>, vector<2x32xf32> -> vector<4x32xf32>
    %120 = arith.truncf %119 : vector<4x32xf32> to vector<4x32xbf16>
    %cst_47 = arith.constant dense<0.000000e+00> : vector<4x256xf32>
    %121 = tpu.matmul %120, %0, %cst_47 {dimension_numbers = #tpu.dot_dimension_numbers<[1], [0], [0], [1], [0, 0, 1, 1], [], []>} : vector<4x32xbf16>, vector<32x256xbf16>, vector<4x256xf32> -> vector<4x256xf32>
    %122 = arith.addf %59, %121 : vector<4x256xf32>
    %123 = arith.negf %122 : vector<4x256xf32>
    %124 = math.exp %123 : vector<4x256xf32>
    %cst_48 = arith.constant 1.000000e+00 : f32
    %125 = vector.broadcast %cst_48 : f32 to vector<4x256xf32>
    %126 = arith.addf %125, %124 : vector<4x256xf32>
    %127 = arith.divf %125, %126 : vector<4x256xf32>
    %128 = math.tanh %122 : vector<4x256xf32>
    %129 = vector.extract_strided_slice %127 {offsets = [0, 0], sizes = [2, 32], strides = [1, 1]} : vector<4x256xf32> to vector<2x32xf32>
    %130 = vector.extract_strided_slice %127 {offsets = [0, 32], sizes = [2, 32], strides = [1, 1]} : vector<4x256xf32> to vector<2x32xf32>
    %131 = vector.extract_strided_slice %128 {offsets = [0, 64], sizes = [2, 32], strides = [1, 1]} : vector<4x256xf32> to vector<2x32xf32>
    %132 = vector.extract_strided_slice %127 {offsets = [0, 96], sizes = [2, 32], strides = [1, 1]} : vector<4x256xf32> to vector<2x32xf32>
    %133 = arith.addf %129, %130 : vector<2x32xf32>
    %134 = arith.mulf %133, %131 : vector<2x32xf32>
    %135 = math.tanh %134 : vector<2x32xf32>
    %136 = arith.mulf %132, %135 : vector<2x32xf32>
    %137 = vector.extract_strided_slice %127 {offsets = [2, 128], sizes = [2, 32], strides = [1, 1]} : vector<4x256xf32> to vector<2x32xf32>
    %138 = vector.extract_strided_slice %127 {offsets = [2, 160], sizes = [2, 32], strides = [1, 1]} : vector<4x256xf32> to vector<2x32xf32>
    %139 = vector.extract_strided_slice %128 {offsets = [2, 192], sizes = [2, 32], strides = [1, 1]} : vector<4x256xf32> to vector<2x32xf32>
    %140 = vector.extract_strided_slice %127 {offsets = [2, 224], sizes = [2, 32], strides = [1, 1]} : vector<4x256xf32> to vector<2x32xf32>
    %141 = arith.addf %137, %138 : vector<2x32xf32>
    %142 = arith.mulf %141, %139 : vector<2x32xf32>
    %143 = math.tanh %142 : vector<2x32xf32>
    %144 = arith.mulf %140, %143 : vector<2x32xf32>
    %145 = tpu.concatenate %136, %144 in 0 : vector<2x32xf32>, vector<2x32xf32> -> vector<4x32xf32>
    %146 = arith.truncf %145 : vector<4x32xf32> to vector<4x32xbf16>
    %cst_49 = arith.constant dense<0.000000e+00> : vector<4x256xf32>
    %147 = tpu.matmul %146, %0, %cst_49 {dimension_numbers = #tpu.dot_dimension_numbers<[1], [0], [0], [1], [0, 0, 1, 1], [], []>} : vector<4x32xbf16>, vector<32x256xbf16>, vector<4x256xf32> -> vector<4x256xf32>
    %148 = arith.addf %60, %147 : vector<4x256xf32>
    %149 = arith.negf %148 : vector<4x256xf32>
    %150 = math.exp %149 : vector<4x256xf32>
    %cst_50 = arith.constant 1.000000e+00 : f32
    %151 = vector.broadcast %cst_50 : f32 to vector<4x256xf32>
    %152 = arith.addf %151, %150 : vector<4x256xf32>
    %153 = arith.divf %151, %152 : vector<4x256xf32>
    %154 = math.tanh %148 : vector<4x256xf32>
    %155 = vector.extract_strided_slice %153 {offsets = [0, 0], sizes = [2, 32], strides = [1, 1]} : vector<4x256xf32> to vector<2x32xf32>
    %156 = vector.extract_strided_slice %153 {offsets = [0, 32], sizes = [2, 32], strides = [1, 1]} : vector<4x256xf32> to vector<2x32xf32>
    %157 = vector.extract_strided_slice %154 {offsets = [0, 64], sizes = [2, 32], strides = [1, 1]} : vector<4x256xf32> to vector<2x32xf32>
    %158 = vector.extract_strided_slice %153 {offsets = [0, 96], sizes = [2, 32], strides = [1, 1]} : vector<4x256xf32> to vector<2x32xf32>
    %159 = arith.addf %155, %156 : vector<2x32xf32>
    %160 = arith.mulf %159, %157 : vector<2x32xf32>
    %161 = math.tanh %160 : vector<2x32xf32>
    %162 = arith.mulf %158, %161 : vector<2x32xf32>
    %163 = vector.extract_strided_slice %153 {offsets = [2, 128], sizes = [2, 32], strides = [1, 1]} : vector<4x256xf32> to vector<2x32xf32>
    %164 = vector.extract_strided_slice %153 {offsets = [2, 160], sizes = [2, 32], strides = [1, 1]} : vector<4x256xf32> to vector<2x32xf32>
    %165 = vector.extract_strided_slice %154 {offsets = [2, 192], sizes = [2, 32], strides = [1, 1]} : vector<4x256xf32> to vector<2x32xf32>
    %166 = vector.extract_strided_slice %153 {offsets = [2, 224], sizes = [2, 32], strides = [1, 1]} : vector<4x256xf32> to vector<2x32xf32>
    %167 = arith.addf %163, %164 : vector<2x32xf32>
    %168 = arith.mulf %167, %165 : vector<2x32xf32>
    %169 = math.tanh %168 : vector<2x32xf32>
    %170 = arith.mulf %166, %169 : vector<2x32xf32>
    %171 = tpu.concatenate %162, %170 in 0 : vector<2x32xf32>, vector<2x32xf32> -> vector<4x32xf32>
    %172 = arith.truncf %171 : vector<4x32xf32> to vector<4x32xbf16>
    %cst_51 = arith.constant dense<0.000000e+00> : vector<4x256xf32>
    %173 = tpu.matmul %172, %0, %cst_51 {dimension_numbers = #tpu.dot_dimension_numbers<[1], [0], [0], [1], [0, 0, 1, 1], [], []>} : vector<4x32xbf16>, vector<32x256xbf16>, vector<4x256xf32> -> vector<4x256xf32>
    %174 = arith.addf %61, %173 : vector<4x256xf32>
    %175 = arith.negf %174 : vector<4x256xf32>
    %176 = math.exp %175 : vector<4x256xf32>
    %cst_52 = arith.constant 1.000000e+00 : f32
    %177 = vector.broadcast %cst_52 : f32 to vector<4x256xf32>
    %178 = arith.addf %177, %176 : vector<4x256xf32>
    %179 = arith.divf %177, %178 : vector<4x256xf32>
    %180 = math.tanh %174 : vector<4x256xf32>
    %181 = vector.extract_strided_slice %179 {offsets = [0, 0], sizes = [2, 32], strides = [1, 1]} : vector<4x256xf32> to vector<2x32xf32>
    %182 = vector.extract_strided_slice %179 {offsets = [0, 32], sizes = [2, 32], strides = [1, 1]} : vector<4x256xf32> to vector<2x32xf32>
    %183 = vector.extract_strided_slice %180 {offsets = [0, 64], sizes = [2, 32], strides = [1, 1]} : vector<4x256xf32> to vector<2x32xf32>
    %184 = vector.extract_strided_slice %179 {offsets = [0, 96], sizes = [2, 32], strides = [1, 1]} : vector<4x256xf32> to vector<2x32xf32>
    %185 = arith.addf %181, %182 : vector<2x32xf32>
    %186 = arith.mulf %185, %183 : vector<2x32xf32>
    %187 = math.tanh %186 : vector<2x32xf32>
    %188 = arith.mulf %184, %187 : vector<2x32xf32>
    %189 = vector.extract_strided_slice %179 {offsets = [2, 128], sizes = [2, 32], strides = [1, 1]} : vector<4x256xf32> to vector<2x32xf32>
    %190 = vector.extract_strided_slice %179 {offsets = [2, 160], sizes = [2, 32], strides = [1, 1]} : vector<4x256xf32> to vector<2x32xf32>
    %191 = vector.extract_strided_slice %180 {offsets = [2, 192], sizes = [2, 32], strides = [1, 1]} : vector<4x256xf32> to vector<2x32xf32>
    %192 = vector.extract_strided_slice %179 {offsets = [2, 224], sizes = [2, 32], strides = [1, 1]} : vector<4x256xf32> to vector<2x32xf32>
    %193 = arith.addf %189, %190 : vector<2x32xf32>
    %194 = arith.mulf %193, %191 : vector<2x32xf32>
    %195 = math.tanh %194 : vector<2x32xf32>
    %196 = arith.mulf %192, %195 : vector<2x32xf32>
    %197 = arith.mulf %188, %170 : vector<2x32xf32>
    %198 = math.tanh %197 : vector<2x32xf32>
    %199 = arith.mulf %162, %196 : vector<2x32xf32>
    %200 = math.tanh %199 : vector<2x32xf32>
    %201 = arith.maximumf %198, %200 : vector<2x32xf32>
    %202 = tpu.concatenate %188, %196 in 0 : vector<2x32xf32>, vector<2x32xf32> -> vector<4x32xf32>
    %203 = arith.truncf %202 : vector<4x32xf32> to vector<4x32xbf16>
    %cst_53 = arith.constant dense<0.000000e+00> : vector<4x256xf32>
    %204 = tpu.matmul %203, %0, %cst_53 {dimension_numbers = #tpu.dot_dimension_numbers<[1], [0], [0], [1], [0, 0, 1, 1], [], []>} : vector<4x32xbf16>, vector<32x256xbf16>, vector<4x256xf32> -> vector<4x256xf32>
    %205 = arith.addf %62, %204 : vector<4x256xf32>
    %206 = arith.negf %205 : vector<4x256xf32>
    %207 = math.exp %206 : vector<4x256xf32>
    %cst_54 = arith.constant 1.000000e+00 : f32
    %208 = vector.broadcast %cst_54 : f32 to vector<4x256xf32>
    %209 = arith.addf %208, %207 : vector<4x256xf32>
    %210 = arith.divf %208, %209 : vector<4x256xf32>
    %211 = math.tanh %205 : vector<4x256xf32>
    %212 = vector.extract_strided_slice %210 {offsets = [0, 0], sizes = [2, 32], strides = [1, 1]} : vector<4x256xf32> to vector<2x32xf32>
    %213 = vector.extract_strided_slice %210 {offsets = [0, 32], sizes = [2, 32], strides = [1, 1]} : vector<4x256xf32> to vector<2x32xf32>
    %214 = vector.extract_strided_slice %211 {offsets = [0, 64], sizes = [2, 32], strides = [1, 1]} : vector<4x256xf32> to vector<2x32xf32>
    %215 = vector.extract_strided_slice %210 {offsets = [0, 96], sizes = [2, 32], strides = [1, 1]} : vector<4x256xf32> to vector<2x32xf32>
    %216 = arith.addf %212, %213 : vector<2x32xf32>
    %217 = arith.mulf %216, %214 : vector<2x32xf32>
    %218 = math.tanh %217 : vector<2x32xf32>
    %219 = arith.mulf %215, %218 : vector<2x32xf32>
    %220 = vector.extract_strided_slice %210 {offsets = [2, 128], sizes = [2, 32], strides = [1, 1]} : vector<4x256xf32> to vector<2x32xf32>
    %221 = vector.extract_strided_slice %210 {offsets = [2, 160], sizes = [2, 32], strides = [1, 1]} : vector<4x256xf32> to vector<2x32xf32>
    %222 = vector.extract_strided_slice %211 {offsets = [2, 192], sizes = [2, 32], strides = [1, 1]} : vector<4x256xf32> to vector<2x32xf32>
    %223 = vector.extract_strided_slice %210 {offsets = [2, 224], sizes = [2, 32], strides = [1, 1]} : vector<4x256xf32> to vector<2x32xf32>
    %224 = arith.addf %220, %221 : vector<2x32xf32>
    %225 = arith.mulf %224, %222 : vector<2x32xf32>
    %226 = math.tanh %225 : vector<2x32xf32>
    %227 = arith.mulf %223, %226 : vector<2x32xf32>
    %228 = arith.mulf %219, %144 : vector<2x32xf32>
    %229 = math.tanh %228 : vector<2x32xf32>
    %230 = arith.maximumf %201, %229 : vector<2x32xf32>
    %231 = arith.mulf %136, %227 : vector<2x32xf32>
    %232 = math.tanh %231 : vector<2x32xf32>
    %233 = arith.maximumf %230, %232 : vector<2x32xf32>
    %234 = tpu.concatenate %219, %227 in 0 : vector<2x32xf32>, vector<2x32xf32> -> vector<4x32xf32>
    %235 = arith.truncf %234 : vector<4x32xf32> to vector<4x32xbf16>
    %cst_55 = arith.constant dense<0.000000e+00> : vector<4x256xf32>
    %236 = tpu.matmul %235, %0, %cst_55 {dimension_numbers = #tpu.dot_dimension_numbers<[1], [0], [0], [1], [0, 0, 1, 1], [], []>} : vector<4x32xbf16>, vector<32x256xbf16>, vector<4x256xf32> -> vector<4x256xf32>
    %237 = arith.addf %63, %236 : vector<4x256xf32>
    %238 = arith.negf %237 : vector<4x256xf32>
    %239 = math.exp %238 : vector<4x256xf32>
    %cst_56 = arith.constant 1.000000e+00 : f32
    %240 = vector.broadcast %cst_56 : f32 to vector<4x256xf32>
    %241 = arith.addf %240, %239 : vector<4x256xf32>
    %242 = arith.divf %240, %241 : vector<4x256xf32>
    %243 = math.tanh %237 : vector<4x256xf32>
    %244 = vector.extract_strided_slice %242 {offsets = [0, 0], sizes = [2, 32], strides = [1, 1]} : vector<4x256xf32> to vector<2x32xf32>
    %245 = vector.extract_strided_slice %242 {offsets = [0, 32], sizes = [2, 32], strides = [1, 1]} : vector<4x256xf32> to vector<2x32xf32>
    %246 = vector.extract_strided_slice %243 {offsets = [0, 64], sizes = [2, 32], strides = [1, 1]} : vector<4x256xf32> to vector<2x32xf32>
    %247 = vector.extract_strided_slice %242 {offsets = [0, 96], sizes = [2, 32], strides = [1, 1]} : vector<4x256xf32> to vector<2x32xf32>
    %248 = arith.addf %244, %245 : vector<2x32xf32>
    %249 = arith.mulf %248, %246 : vector<2x32xf32>
    %250 = math.tanh %249 : vector<2x32xf32>
    %251 = arith.mulf %247, %250 : vector<2x32xf32>
    %252 = vector.extract_strided_slice %242 {offsets = [2, 128], sizes = [2, 32], strides = [1, 1]} : vector<4x256xf32> to vector<2x32xf32>
    %253 = vector.extract_strided_slice %242 {offsets = [2, 160], sizes = [2, 32], strides = [1, 1]} : vector<4x256xf32> to vector<2x32xf32>
    %254 = vector.extract_strided_slice %243 {offsets = [2, 192], sizes = [2, 32], strides = [1, 1]} : vector<4x256xf32> to vector<2x32xf32>
    %255 = vector.extract_strided_slice %242 {offsets = [2, 224], sizes = [2, 32], strides = [1, 1]} : vector<4x256xf32> to vector<2x32xf32>
    %256 = arith.addf %252, %253 : vector<2x32xf32>
    %257 = arith.mulf %256, %254 : vector<2x32xf32>
    %258 = math.tanh %257 : vector<2x32xf32>
    %259 = arith.mulf %255, %258 : vector<2x32xf32>
    %260 = arith.mulf %251, %118 : vector<2x32xf32>
    %261 = math.tanh %260 : vector<2x32xf32>
    %262 = arith.maximumf %233, %261 : vector<2x32xf32>
    %263 = arith.mulf %110, %259 : vector<2x32xf32>
    %264 = math.tanh %263 : vector<2x32xf32>
    %265 = arith.maximumf %262, %264 : vector<2x32xf32>
    %266 = tpu.concatenate %251, %259 in 0 : vector<2x32xf32>, vector<2x32xf32> -> vector<4x32xf32>
    %267 = arith.truncf %266 : vector<4x32xf32> to vector<4x32xbf16>
    %cst_57 = arith.constant dense<0.000000e+00> : vector<4x256xf32>
    %268 = tpu.matmul %267, %0, %cst_57 {dimension_numbers = #tpu.dot_dimension_numbers<[1], [0], [0], [1], [0, 0, 1, 1], [], []>} : vector<4x32xbf16>, vector<32x256xbf16>, vector<4x256xf32> -> vector<4x256xf32>
    %269 = arith.addf %64, %268 : vector<4x256xf32>
    %270 = arith.negf %269 : vector<4x256xf32>
    %271 = math.exp %270 : vector<4x256xf32>
    %cst_58 = arith.constant 1.000000e+00 : f32
    %272 = vector.broadcast %cst_58 : f32 to vector<4x256xf32>
    %273 = arith.addf %272, %271 : vector<4x256xf32>
    %274 = arith.divf %272, %273 : vector<4x256xf32>
    %275 = math.tanh %269 : vector<4x256xf32>
    %276 = vector.extract_strided_slice %274 {offsets = [0, 0], sizes = [2, 32], strides = [1, 1]} : vector<4x256xf32> to vector<2x32xf32>
    %277 = vector.extract_strided_slice %274 {offsets = [0, 32], sizes = [2, 32], strides = [1, 1]} : vector<4x256xf32> to vector<2x32xf32>
    %278 = vector.extract_strided_slice %275 {offsets = [0, 64], sizes = [2, 32], strides = [1, 1]} : vector<4x256xf32> to vector<2x32xf32>
    %279 = vector.extract_strided_slice %274 {offsets = [0, 96], sizes = [2, 32], strides = [1, 1]} : vector<4x256xf32> to vector<2x32xf32>
    %280 = arith.addf %276, %277 : vector<2x32xf32>
    %281 = arith.mulf %280, %278 : vector<2x32xf32>
    %282 = math.tanh %281 : vector<2x32xf32>
    %283 = arith.mulf %279, %282 : vector<2x32xf32>
    %284 = vector.extract_strided_slice %274 {offsets = [2, 128], sizes = [2, 32], strides = [1, 1]} : vector<4x256xf32> to vector<2x32xf32>
    %285 = vector.extract_strided_slice %274 {offsets = [2, 160], sizes = [2, 32], strides = [1, 1]} : vector<4x256xf32> to vector<2x32xf32>
    %286 = vector.extract_strided_slice %275 {offsets = [2, 192], sizes = [2, 32], strides = [1, 1]} : vector<4x256xf32> to vector<2x32xf32>
    %287 = vector.extract_strided_slice %274 {offsets = [2, 224], sizes = [2, 32], strides = [1, 1]} : vector<4x256xf32> to vector<2x32xf32>
    %288 = arith.addf %284, %285 : vector<2x32xf32>
    %289 = arith.mulf %288, %286 : vector<2x32xf32>
    %290 = math.tanh %289 : vector<2x32xf32>
    %291 = arith.mulf %287, %290 : vector<2x32xf32>
    %292 = arith.mulf %283, %92 : vector<2x32xf32>
    %293 = math.tanh %292 : vector<2x32xf32>
    %294 = arith.maximumf %265, %293 : vector<2x32xf32>
    %295 = arith.mulf %84, %291 : vector<2x32xf32>
    %296 = math.tanh %295 : vector<2x32xf32>
    %297 = arith.maximumf %294, %296 : vector<2x32xf32>
    %c0_59 = arith.constant 0 : index
    %c0_60 = arith.constant 0 : index
    %298 = vector.load %arg3[%c0_59, %c0_60] : memref<32x128xf32, #tpu.memory_space<vmem>>, vector<32x128xf32>
    %cst_61 = arith.constant dense<0.000000e+00> : vector<2x128xf32>
    %299 = tpu.matmul %297, %298, %cst_61 {dimension_numbers = #tpu.dot_dimension_numbers<[1], [0], [0], [1], [0, 0, 1, 1], [], []>} : vector<2x32xf32>, vector<32x128xf32>, vector<2x128xf32> -> vector<2x128xf32>
    %c0_62 = arith.constant 0 : index
    %c0_63 = arith.constant 0 : index
    %300 = vector.load %arg4[%c0_62, %c0_63] : memref<1x128xf32, #tpu.memory_space<vmem>>, vector<1x128xf32>
    %301 = vector.broadcast %300 : vector<1x128xf32> to vector<2x128xf32>
    %302 = arith.addf %299, %301 : vector<2x128xf32>
    %c0_64 = arith.constant 0 : index
    %c0_65 = arith.constant 0 : index
    %303 = vector.load %arg5[%c0_64, %c0_65] : memref<2x128xf32, #tpu.memory_space<vmem>>, vector<2x128xf32>
    tpu.vector_store %arg5[%c0_64, %c0_65], %302 {strides = array<i32>} : memref<2x128xf32, #tpu.memory_space<vmem>>, vector<2x128xf32>,
    return
  }
}

</mosaic_0001>

<llo_original>
// kernel: bilstm_forward.1
$region0: #{bilstm_forward.1}
  #allocation0 [shape = 'u32[]', space=smem, size = 0x4, offset = 0x4, fixed_abs, tag = 'smem constant byte address 0x4 - core index']
  #allocation1 [shape = 'u32[144,128]{1,0:T(1,128)}', space=vmem, size = 0x12000, scoped, tag = 'internal scratch']
  %s0 = inlined_call_operand.hbm [shape: s32[2,8], index: 0, kind: input, shape index: {}]
  %s1 = inlined_call_operand.hbm [shape: f32[50,256], index: 1, kind: input, shape index: {}]
  %s2 = inlined_call_operand.hbm [shape: bf16[32,256], index: 2, kind: input, shape index: {}]
  %s3 = inlined_call_operand.hbm [shape: f32[32,128], index: 3, kind: input, shape index: {}]
  %s4 = inlined_call_operand.vmem [shape: f32[1,128], index: 4, kind: input, shape index: {}]
  %s5 = inlined_call_operand.hbm [shape: f32[2,128], index: 5, kind: output, shape index: {}]
  %s6 = sld [smem:[#allocation0]]
  $region46: #{bilstm_forward.1} parent=0
    _
  %s8 = ssub.s32 1, %s6
  %s9 = scalar_select 0, %s8, %s6
  $region1: #{bilstm_forward.1} parent=0
    #allocation2 [shape = 'u8[1024]{0}', space=smem, size = 0x400, scoped, tag = 'input window, operand 0, single buffered']
    #allocation3 [shape = 's32[1]{0}', space=sflag, size = 0x4, scoped, tag = 'scoped memory for bilstm_forward.1']
    #allocation4 [shape = 's32[1]{0}', space=sflag, size = 0x4, scoped, tag = 'scoped memory for bilstm_forward.1']
    #allocation5 [shape = 's32[1]{0}', space=sflag, size = 0x4, scoped, tag = 'scoped memory for bilstm_forward.1']
    #allocation6 [shape = 'u8[57344]{0}', space=vmem, size = 0xe000, scoped, tag = 'input window, operand 1, single buffered']
    #allocation7 [shape = 'u8[16384]{0}', space=vmem, size = 0x4000, scoped, tag = 'input window, operand 2, single buffered']
    #allocation8 [shape = 's32[1]{0}', space=sflag, size = 0x4, scoped, tag = 'scoped memory for bilstm_forward.1']
    #allocation9 [shape = 'u8[16384]{0}', space=vmem, size = 0x4000, scoped, tag = 'input window, operand 3, single buffered']
    #allocation10 [shape = 'u8[1024]{0}', space=vmem, size = 0x400, scoped, tag = 'output window, operand 0, single buffered']
    %10 = vsyncpa [#allocation5], 0
    %11 = vsyncpa [#allocation3], 0
    %12 = vsyncpa [#allocation8], 0
    %13 = vsyncpa [#allocation4], 0
    // Predicated region
    $region2: #{bilstm_forward.1} parent=1 // pred_check
      _
    $region3: #{bilstm_forward.1} parent=1 // pred_check_branch
      %15 = sbr.rel (0) target = $region5
    $region4: #{bilstm_forward.1} parent=1 // pred_region
      %s17 = ssub.s32 32, 32
      %18 = vsyncadd [#allocation5], %s17
      %21 = dma.hbm_to_smem %s0, 32, [#allocation2], [#allocation5]
    $region5: #{bilstm_forward.1} parent=1 // pred_fallthru
      _
    // Predicated region
    $region6: #{bilstm_forward.1} parent=1 // pred_check
      _
    $region7: #{bilstm_forward.1} parent=1 // pred_check_branch
      %23 = sbr.rel (0) target = $region9
    $region8: #{bilstm_forward.1} parent=1 // pred_region
      %s25 = ssub.s32 1792, 1792
      %26 = vsyncadd [#allocation3], %s25
      %s27 = sshll.u32 [#allocation6], 4
      %s28 = int_to_ptr.vmem [resolvable:$true] %s27
      %33 = dma.hbm_to_vmem [thread:$0]  %s1, 1792, %s28, [#allocation3], 256, 256, 16
    $region9: #{bilstm_forward.1} parent=1 // pred_fallthru
      _
    // Predicated region
    $region10: #{bilstm_forward.1} parent=1 // pred_check
      _
    $region11: #{bilstm_forward.1} parent=1 // pred_check_branch
      %35 = sbr.rel (0) target = $region13
    $region12: #{bilstm_forward.1} parent=1 // pred_region
      %s37 = ssub.s32 512, 512
      %38 = vsyncadd [#allocation8], %s37
      %s39 = sshll.u32 [#allocation7], 4
      %s40 = int_to_ptr.vmem [resolvable:$true] %s39
      %45 = dma.hbm_to_vmem [thread:$0]  %s2, 512, %s40, [#allocation8], 128, 128, 8
    $region13: #{bilstm_forward.1} parent=1 // pred_fallthru
      _
    // Predicated region
    $region14: #{bilstm_forward.1} parent=1 // pred_check
      _
    $region15: #{bilstm_forward.1} parent=1 // pred_check_branch
      %47 = sbr.rel (0) target = $region17
    $region16: #{bilstm_forward.1} parent=1 // pred_region
      %s49 = ssub.s32 512, 512
      %50 = vsyncadd [#allocation8], %s49
      %s51 = sshll.u32 [#allocation9], 4
      %s52 = int_to_ptr.vmem [resolvable:$true] %s51
      %57 = dma.hbm_to_vmem [thread:$0]  %s3, 512, %s52, [#allocation8], 128, 128, 8
    $region17: #{bilstm_forward.1} parent=1 // pred_fallthru
      _
    // Predicated region
    $region18: #{bilstm_forward.1} parent=1 // pred_check
      _
    $region19: #{bilstm_forward.1} parent=1 // pred_check_branch
      %59 = sbr.rel (0) target = $region21
    $region20: #{bilstm_forward.1} parent=1 // pred_region
      _
    $region21: #{bilstm_forward.1} parent=1 // pred_fallthru
      _
    // Predicated region
    $region22: #{bilstm_forward.1} parent=1 // pred_check
      _
    $region23: #{bilstm_forward.1} parent=1 // pred_check_branch
      %61 = sbr.rel (0) target = $region25
    $region24: #{bilstm_forward.1} parent=1 // pred_region
      %62 = dma.done [#allocation5], 32
    $region25: #{bilstm_forward.1} parent=1 // pred_fallthru
      _
    // Predicated region
    $region26: #{bilstm_forward.1} parent=1 // pred_check
      _
    $region27: #{bilstm_forward.1} parent=1 // pred_check_branch
      %64 = sbr.rel (0) target = $region29
    $region28: #{bilstm_forward.1} parent=1 // pred_region
      %65 = dma.done [#allocation3], 1792
    $region29: #{bilstm_forward.1} parent=1 // pred_fallthru
      _
    // Predicated region
    $region30: #{bilstm_forward.1} parent=1 // pred_check
      _
    $region31: #{bilstm_forward.1} parent=1 // pred_check_branch
      %67 = sbr.rel (0) target = $region33
    $region32: #{bilstm_forward.1} parent=1 // pred_region
      %68 = dma.done [#allocation8], 512
    $region33: #{bilstm_forward.1} parent=1 // pred_fallthru
      _
    // Predicated region
    $region34: #{bilstm_forward.1} parent=1 // pred_check
      _
    $region35: #{bilstm_forward.1} parent=1 // pred_check_branch
      %70 = sbr.rel (0) target = $region37
    $region36: #{bilstm_forward.1} parent=1 // pred_region
      %71 = dma.done [#allocation8], 512
    $region37: #{bilstm_forward.1} parent=1 // pred_fallthru
      _
    %72 = sfence
    %v74 = vld [vmem:[#allocation7] sm:$0xff]
    %v75 = vld [vmem:[#allocation7 + $0x8] sm:$0xff]
    %v76 = vld [vmem:[#allocation7 + $0x10] sm:$0xff]
    %v77 = vld [vmem:[#allocation7 + $0x18] sm:$0xff]
    %s78 = sld [smem:[#allocation2]]
    %s79 = sshra.s32 %s78, 3
    %s80 = sand.u32 %s78, 7
    %s81 = sshra.s32 %s78, 3
    %s82 = sand.u32 %s78, 7
    %s83 = smul.u32 %s79, 2
    %s84 = smul.u32 %s83, 8
    %s85 = sadd.s32 %s84, %s82
    %s86 = scalar_lea.vmem [#allocation6], %s85
    %v87 = vld [vmem:[%s86] ss:$8 sm:$0x3]
    %s88 = sld [smem:[#allocation2 + $0x80]]
    %s89 = sshra.s32 %s88, 3
    %s90 = sand.u32 %s88, 7
    %s91 = sshra.s32 %s88, 3
    %s92 = sand.u32 %s88, 7
    %s93 = smul.u32 %s89, 2
    %s94 = smul.u32 %s93, 8
    %s95 = sadd.s32 %s94, %s92
    %s96 = scalar_lea.vmem [#allocation6], %s95
    %v97 = vld [vmem:[%s96] ss:$8 sm:$0x3]
    %v99 = vlaneseq
    %v100 = vshrl.u32 %v99, 7
    %v101 = vsub.s32 0, %v100
    %v102 = vrot.slane %v87, %v101
    %v103 = vlaneseq
    %v104 = vshrl.u32 %v103, 7
    %v105 = vsub.s32 1, %v104
    %v106 = vrot.slane %v87, %v105
    %v110 = vlaneseq
    %v111 = vshrl.u32 %v110, 7
    %v112 = vsub.s32 0, %v111
    %v113 = vrot.slane %v97, %v112
    %v114 = vlaneseq
    %v115 = vshrl.u32 %v114, 7
    %v116 = vsub.s32 1, %v115
    %v117 = vrot.slane %v97, %v116
    %vm120 = vcmask 1040384
    %v121 = vsel %vm120, %v102, %v113
    %v122 = vsel %vm120, %v106, %v117
    %s123 = sld [smem:[#allocation2 + $0x1]]
    %s124 = sshra.s32 %s123, 3
    %s125 = sand.u32 %s123, 7
    %s126 = sshra.s32 %s123, 3
    %s127 = sand.u32 %s123, 7
    %s128 = smul.u32 %s124, 2
    %s129 = smul.u32 %s128, 8
    %s130 = sadd.s32 %s129, %s127
    %s131 = scalar_lea.vmem [#allocation6], %s130
    %v132 = vld [vmem:[%s131] ss:$8 sm:$0x3]
    %s133 = sld [smem:[#allocation2 + $0x81]]
    %s134 = sshra.s32 %s133, 3
    %s135 = sand.u32 %s133, 7
    %s136 = sshra.s32 %s133, 3
    %s137 = sand.u32 %s133, 7
    %s138 = smul.u32 %s134, 2
    %s139 = smul.u32 %s138, 8
    %s140 = sadd.s32 %s139, %s137
    %s141 = scalar_lea.vmem [#allocation6], %s140
    %v142 = vld [vmem:[%s141] ss:$8 sm:$0x3]
    %v144 = vlaneseq
    %v145 = vshrl.u32 %v144, 7
    %v146 = vsub.s32 0, %v145
    %v147 = vrot.slane %v132, %v146
    %v148 = vlaneseq
    %v149 = vshrl.u32 %v148, 7
    %v150 = vsub.s32 1, %v149
    %v151 = vrot.slane %v132, %v150
    %v155 = vlaneseq
    %v156 = vshrl.u32 %v155, 7
    %v157 = vsub.s32 0, %v156
    %v158 = vrot.slane %v142, %v157
    %v159 = vlaneseq
    %v160 = vshrl.u32 %v159, 7
    %v161 = vsub.s32 1, %v160
    %v162 = vrot.slane %v142, %v161
    %v165 = vsel %vm120, %v147, %v158
    %v166 = vsel %vm120, %v151, %v162
    %s167 = sld [smem:[#allocation2 + $0x2]]
    %s168 = sshra.s32 %s167, 3
    %s169 = sand.u32 %s167, 7
    %s170 = sshra.s32 %s167, 3
    %s171 = sand.u32 %s167, 7
    %s172 = smul.u32 %s168, 2
    %s173 = smul.u32 %s172, 8
    %s174 = sadd.s32 %s173, %s171
    %s175 = scalar_lea.vmem [#allocation6], %s174
    %v176 = vld [vmem:[%s175] ss:$8 sm:$0x3]
    %s177 = sld [smem:[#allocation2 + $0x82]]
    %s178 = sshra.s32 %s177, 3
    %s179 = sand.u32 %s177, 7
    %s180 = sshra.s32 %s177, 3
    %s181 = sand.u32 %s177, 7
    %s182 = smul.u32 %s178, 2
    %s183 = smul.u32 %s182, 8
    %s184 = sadd.s32 %s183, %s181
    %s185 = scalar_lea.vmem [#allocation6], %s184
    %v186 = vld [vmem:[%s185] ss:$8 sm:$0x3]
    %v188 = vlaneseq
    %v189 = vshrl.u32 %v188, 7
    %v190 = vsub.s32 0, %v189
    %v191 = vrot.slane %v176, %v190
    %v192 = vlaneseq
    %v193 = vshrl.u32 %v192, 7
    %v194 = vsub.s32 1, %v193
    %v195 = vrot.slane %v176, %v194
    %v199 = vlaneseq
    %v200 = vshrl.u32 %v199, 7
    %v201 = vsub.s32 0, %v200
    %v202 = vrot.slane %v186, %v201
    %v203 = vlaneseq
    %v204 = vshrl.u32 %v203, 7
    %v205 = vsub.s32 1, %v204
    %v206 = vrot.slane %v186, %v205
    %v209 = vsel %vm120, %v191, %v202
    %v210 = vsel %vm120, %v195, %v206
    %s211 = sld [smem:[#allocation2 + $0x3]]
    %s212 = sshra.s32 %s211, 3
    %s213 = sand.u32 %s211, 7
    %s214 = sshra.s32 %s211, 3
    %s215 = sand.u32 %s211, 7
    %s216 = smul.u32 %s212, 2
    %s217 = smul.u32 %s216, 8
    %s218 = sadd.s32 %s217, %s215
    %s219 = scalar_lea.vmem [#allocation6], %s218
    %v220 = vld [vmem:[%s219] ss:$8 sm:$0x3]
    %s221 = sld [smem:[#allocation2 + $0x83]]
    %s222 = sshra.s32 %s221, 3
    %s223 = sand.u32 %s221, 7
    %s224 = sshra.s32 %s221, 3
    %s225 = sand.u32 %s221, 7
    %s226 = smul.u32 %s222, 2
    %s227 = smul.u32 %s226, 8
    %s228 = sadd.s32 %s227, %s225
    %s229 = scalar_lea.vmem [#allocation6], %s228
    %v230 = vld [vmem:[%s229] ss:$8 sm:$0x3]
    %v232 = vlaneseq
    %v233 = vshrl.u32 %v232, 7
    %v234 = vsub.s32 0, %v233
    %v235 = vrot.slane %v220, %v234
    %v236 = vlaneseq
    %v237 = vshrl.u32 %v236, 7
    %v238 = vsub.s32 1, %v237
    %v239 = vrot.slane %v220, %v238
    %v243 = vlaneseq
    %v244 = vshrl.u32 %v243, 7
    %v245 = vsub.s32 0, %v244
    %v246 = vrot.slane %v230, %v245
    %v247 = vlaneseq
    %v248 = vshrl.u32 %v247, 7
    %v249 = vsub.s32 1, %v248
    %v250 = vrot.slane %v230, %v249
    %v253 = vsel %vm120, %v235, %v246
    %v254 = vsel %vm120, %v239, %v250
    %s255 = sld [smem:[#allocation2 + $0x4]]
    %s256 = sshra.s32 %s255, 3
    %s257 = sand.u32 %s255, 7
    %s258 = sshra.s32 %s255, 3
    %s259 = sand.u32 %s255, 7
    %s260 = smul.u32 %s256, 2
    %s261 = smul.u32 %s260, 8
    %s262 = sadd.s32 %s261, %s259
    %s263 = scalar_lea.vmem [#allocation6], %s262
    %v264 = vld [vmem:[%s263] ss:$8 sm:$0x3]
    %s265 = sld [smem:[#allocation2 + $0x84]]
    %s266 = sshra.s32 %s265, 3
    %s267 = sand.u32 %s265, 7
    %s268 = sshra.s32 %s265, 3
    %s269 = sand.u32 %s265, 7
    %s270 = smul.u32 %s266, 2
    %s271 = smul.u32 %s270, 8
    %s272 = sadd.s32 %s271, %s269
    %s273 = scalar_lea.vmem [#allocation6], %s272
    %v274 = vld [vmem:[%s273] ss:$8 sm:$0x3]
    %v276 = vlaneseq
    %v277 = vshrl.u32 %v276, 7
    %v278 = vsub.s32 0, %v277
    %v279 = vrot.slane %v264, %v278
    %v280 = vlaneseq
    %v281 = vshrl.u32 %v280, 7
    %v282 = vsub.s32 1, %v281
    %v283 = vrot.slane %v264, %v282
    %v287 = vlaneseq
    %v288 = vshrl.u32 %v287, 7
    %v289 = vsub.s32 0, %v288
    %v290 = vrot.slane %v274, %v289
    %v291 = vlaneseq
    %v292 = vshrl.u32 %v291, 7
    %v293 = vsub.s32 1, %v292
    %v294 = vrot.slane %v274, %v293
    %v297 = vsel %vm120, %v279, %v290
    %v298 = vsel %vm120, %v283, %v294
    %s299 = sld [smem:[#allocation2 + $0x5]]
    %s300 = sshra.s32 %s299, 3
    %s301 = sand.u32 %s299, 7
    %s302 = sshra.s32 %s299, 3
    %s303 = sand.u32 %s299, 7
    %s304 = smul.u32 %s300, 2
    %s305 = smul.u32 %s304, 8
    %s306 = sadd.s32 %s305, %s303
    %s307 = scalar_lea.vmem [#allocation6], %s306
    %v308 = vld [vmem:[%s307] ss:$8 sm:$0x3]
    %s309 = sld [smem:[#allocation2 + $0x85]]
    %s310 = sshra.s32 %s309, 3
    %s311 = sand.u32 %s309, 7
    %s312 = sshra.s32 %s309, 3
    %s313 = sand.u32 %s309, 7
    %s314 = smul.u32 %s310, 2
    %s315 = smul.u32 %s314, 8
    %s316 = sadd.s32 %s315, %s313
    %s317 = scalar_lea.vmem [#allocation6], %s316
    %v318 = vld [vmem:[%s317] ss:$8 sm:$0x3]
    %v320 = vlaneseq
    %v321 = vshrl.u32 %v320, 7
    %v322 = vsub.s32 0, %v321
    %v323 = vrot.slane %v308, %v322
    %v324 = vlaneseq
    %v325 = vshrl.u32 %v324, 7
    %v326 = vsub.s32 1, %v325
    %v327 = vrot.slane %v308, %v326
    %v331 = vlaneseq
    %v332 = vshrl.u32 %v331, 7
    %v333 = vsub.s32 0, %v332
    %v334 = vrot.slane %v318, %v333
    %v335 = vlaneseq
    %v336 = vshrl.u32 %v335, 7
    %v337 = vsub.s32 1, %v336
    %v338 = vrot.slane %v318, %v337
    %v341 = vsel %vm120, %v323, %v334
    %v342 = vsel %vm120, %v327, %v338
    %s343 = sld [smem:[#allocation2 + $0x6]]
    %s344 = sshra.s32 %s343, 3
    %s345 = sand.u32 %s343, 7
    %s346 = sshra.s32 %s343, 3
    %s347 = sand.u32 %s343, 7
    %s348 = smul.u32 %s344, 2
    %s349 = smul.u32 %s348, 8
    %s350 = sadd.s32 %s349, %s347
    %s351 = scalar_lea.vmem [#allocation6], %s350
    %v352 = vld [vmem:[%s351] ss:$8 sm:$0x3]
    %s353 = sld [smem:[#allocation2 + $0x86]]
    %s354 = sshra.s32 %s353, 3
    %s355 = sand.u32 %s353, 7
    %s356 = sshra.s32 %s353, 3
    %s357 = sand.u32 %s353, 7
    %s358 = smul.u32 %s354, 2
    %s359 = smul.u32 %s358, 8
    %s360 = sadd.s32 %s359, %s357
    %s361 = scalar_lea.vmem [#allocation6], %s360
    %v362 = vld [vmem:[%s361] ss:$8 sm:$0x3]
    %v364 = vlaneseq
    %v365 = vshrl.u32 %v364, 7
    %v366 = vsub.s32 0, %v365
    %v367 = vrot.slane %v352, %v366
    %v368 = vlaneseq
    %v369 = vshrl.u32 %v368, 7
    %v370 = vsub.s32 1, %v369
    %v371 = vrot.slane %v352, %v370
    %v375 = vlaneseq
    %v376 = vshrl.u32 %v375, 7
    %v377 = vsub.s32 0, %v376
    %v378 = vrot.slane %v362, %v377
    %v379 = vlaneseq
    %v380 = vshrl.u32 %v379, 7
    %v381 = vsub.s32 1, %v380
    %v382 = vrot.slane %v362, %v381
    %v385 = vsel %vm120, %v367, %v378
    %v386 = vsel %vm120, %v371, %v382
    %s387 = sld [smem:[#allocation2 + $0x7]]
    %s388 = sshra.s32 %s387, 3
    %s389 = sand.u32 %s387, 7
    %s390 = sshra.s32 %s387, 3
    %s391 = sand.u32 %s387, 7
    %s392 = smul.u32 %s388, 2
    %s393 = smul.u32 %s392, 8
    %s394 = sadd.s32 %s393, %s391
    %s395 = scalar_lea.vmem [#allocation6], %s394
    %v396 = vld [vmem:[%s395] ss:$8 sm:$0x3]
    %s397 = sld [smem:[#allocation2 + $0x87]]
    %s398 = sshra.s32 %s397, 3
    %s399 = sand.u32 %s397, 7
    %s400 = sshra.s32 %s397, 3
    %s401 = sand.u32 %s397, 7
    %s402 = smul.u32 %s398, 2
    %s403 = smul.u32 %s402, 8
    %s404 = sadd.s32 %s403, %s401
    %s405 = scalar_lea.vmem [#allocation6], %s404
    %v406 = vld [vmem:[%s405] ss:$8 sm:$0x3]
    %v408 = vlaneseq
    %v409 = vshrl.u32 %v408, 7
    %v410 = vsub.s32 0, %v409
    %v411 = vrot.slane %v396, %v410
    %v412 = vlaneseq
    %v413 = vshrl.u32 %v412, 7
    %v414 = vsub.s32 1, %v413
    %v415 = vrot.slane %v396, %v414
    %v419 = vlaneseq
    %v420 = vshrl.u32 %v419, 7
    %v421 = vsub.s32 0, %v420
    %v422 = vrot.slane %v406, %v421
    %v423 = vlaneseq
    %v424 = vshrl.u32 %v423, 7
    %v425 = vsub.s32 1, %v424
    %v426 = vrot.slane %v406, %v425
    %v429 = vsel %vm120, %v411, %v422
    %v430 = vsel %vm120, %v415, %v426
    %v433 = vrot.slane %v429, 6
    %v434 = vrot.slane %v430, 6
    %vm437 = vcmask 1041408
    %v438 = vsel %vm437, %v121, %v433
    %v439 = vsel %vm437, %v122, %v434
    %v442 = vrot.slane %v385, 6
    %v443 = vrot.slane %v386, 6
    %v446 = vsel %vm437, %v165, %v442
    %v447 = vsel %vm437, %v166, %v443
    %v450 = vrot.slane %v341, 6
    %v451 = vrot.slane %v342, 6
    %v454 = vsel %vm437, %v209, %v450
    %v455 = vsel %vm437, %v210, %v451
    %v458 = vrot.slane %v297, 6
    %v459 = vrot.slane %v298, 6
    %v462 = vsel %vm437, %v253, %v458
    %v463 = vsel %vm437, %v254, %v459
    %v466 = vrot.slane %v253, 6
    %v467 = vrot.slane %v254, 6
    %v470 = vsel %vm437, %v297, %v466
    %v471 = vsel %vm437, %v298, %v467
    %v474 = vrot.slane %v209, 6
    %v475 = vrot.slane %v210, 6
    %v478 = vsel %vm437, %v341, %v474
    %v479 = vsel %vm437, %v342, %v475
    %v482 = vrot.slane %v165, 6
    %v483 = vrot.slane %v166, 6
    %v486 = vsel %vm437, %v385, %v482
    %v487 = vsel %vm437, %v386, %v483
    %v490 = vrot.slane %v121, 6
    %v491 = vrot.slane %v122, 6
    %v494 = vsel %vm437, %v429, %v490
    %v495 = vsel %vm437, %v430, %v491
    %v496 = vpack.c.bf16 0.0, 0.0
    %v501 = vunpack.c.l.b16 %v74
    %v502 = vunpack.c.h.b16 %v74
    %v503 = vunpack.c.l.b16 %v75
    %v504 = vunpack.c.h.b16 %v75
    %v505 = vunpack.c.l.b16 %v76
    %v506 = vunpack.c.h.b16 %v76
    %v507 = vunpack.c.l.b16 %v77
    %v508 = vunpack.c.h.b16 %v77
    %v509 = vpack.c.b16 %v503, %v501
    %v510 = vpack.c.b16 %v504, %v502
    %v511 = vpack.c.b16 %v507, %v505
    %v512 = vpack.c.b16 %v508, %v506
    %vm517 = vcmask 261120
    %v519 = vsel %vm517, %v496, 0
    %521 = vmatprep.subr.bf16.mxu0 0
    %522 = vmatpush1.bf16.msra.mxu0 0
    %523 = vmatprep.subr.bf16.mxu0 0
    %524 = vmatpush1.bf16.msra.mxu0 0
    %525 = vmatprep.subr.bf16.mxu0 0
    %526 = vmatpush1.bf16.msra.mxu0 0
    %527 = vmatprep.subr.bf16.mxu0 0
    %528 = vmatpush1.bf16.msra.mxu0 0
    %529 = vmatprep.subr.bf16.mxu0 0
    %530 = vmatpush1.bf16.msra.mxu0 0
    %531 = vmatprep.subr.bf16.mxu0 0
    %532 = vmatpush1.bf16.msra.mxu0 0
    %533 = vmatprep.subr.bf16.mxu0 %v512
    %534 = vmatpush1.bf16.msra.mxu0 %v511
    %535 = vmatprep.subr.bf16.mxu0 %v510
    %536 = vmatpush1.bf16.msra.mxu0 %v509
    %537 = vmatprep.subr.bf16.mxu0 0
    %538 = vmatpush2.bf16.msra.mxu0 0
    %539 = vmatprep.subr.bf16.mxu0 0
    %540 = vmatpush2.bf16.msra.mxu0 0
    %541 = vmatprep.subr.bf16.mxu0 0
    %542 = vmatpush2.bf16.msra.mxu0 0
    %543 = vmatprep.subr.bf16.mxu0 0
    %544 = vmatpush2.bf16.msra.mxu0 0
    %545 = vmatprep.subr.bf16.mxu0 0
    %546 = vmatpush2.bf16.msra.mxu0 0
    %547 = vmatprep.subr.bf16.mxu0 0
    %548 = vmatpush2.bf16.msra.mxu0 0
    %549 = vmatprep.subr.bf16.mxu0 0
    %550 = vmatpush2.bf16.msra.mxu0 0
    %551 = vmatprep.subr.bf16.mxu0 0
    %552 = vmatpush2.bf16.msra.mxu0 0
    %553 = vmatprep.mubr.bf16.mxu0 0
    %554 = vmatmul.mubr.bf16.gmra.mxu0 %v519
    %v555 = vpop.f32.mrf.mxu0
    %v556 = vadd.f32 0.0, %v555
    %v557 = vpop.f32.mrf.mxu0
    %v558 = vadd.f32 0.0, %v557
    %v559 = vpop.f32.mrf.mxu0
    %v560 = vpop.f32.mrf.mxu0
    %561 = vdwg.mxu0
    %v562 = vadd.f32 %v438, %v556
    %v563 = vadd.f32 %v439, %v558
    %v564 = vxor.u32 %v562, 2147483648
    %v565 = vxor.u32 %v563, 2147483648
    %v566 = vmul.f32 %v564, 1.442695
    %v567 = vpow.pop %v566
    %v568 = vmul.f32 %v565, 1.442695
    %v569 = vpow.pop %v568
    %v570 = vadd.f32 %v567, 1.0
    %v571 = vadd.f32 %v569, 1.0
    %v572 = vrcp.pop %v570
    %v573 = vmul.f32 1.0, %v572
    %v574 = vrcp.pop %v571
    %v575 = vmul.f32 1.0, %v574
    %v576 = vtanh.pop %v562
    %v577 = vtanh.pop %v563
    %579 = vrot.lane.b32.xlu0 %v573, 96
    %v580 = vpop.permute.xlu0 %579
    %v582 = vadd.f32 %v573, %v580
    %584 = vrot.lane.b32.xlu0 %v576, 64
    %v585 = vpop.permute.xlu0 %584
    %v587 = vmul.f32 %v582, %v585
    %v588 = vtanh.pop %v587
    %590 = vrot.lane.b32.xlu0 %v588, 96
    %v591 = vpop.permute.xlu0 %590
    %v593 = vmul.f32 %v573, %v591
    %595 = vrot.lane.b32.xlu0 %v575, 96
    %v596 = vpop.permute.xlu0 %595
    %v598 = vadd.f32 %v575, %v596
    %600 = vrot.lane.b32.xlu0 %v577, 64
    %v601 = vpop.permute.xlu0 %600
    %v603 = vmul.f32 %v598, %v601
    %v604 = vtanh.pop %v603
    %606 = vrot.lane.b32.xlu0 %v604, 96
    %v607 = vpop.permute.xlu0 %606
    %v609 = vmul.f32 %v575, %v607
    %v610 = vsel %vm437, %v593, %v609
    %v611 = vpack.c.bf16 %v610, %v610
    %613 = vrot.lane.b32.xlu0 %v611, 32
    %v614 = vpop.permute.xlu0 %613
    %v616 = vsel %vm517, %v614, 0
    %618 = vmatprep.subr.bf16.mxu0 0
    %619 = vmatpush1.bf16.msra.mxu0 0
    %620 = vmatprep.subr.bf16.mxu0 0
    %621 = vmatpush1.bf16.msra.mxu0 0
    %622 = vmatprep.subr.bf16.mxu0 0
    %623 = vmatpush1.bf16.msra.mxu0 0
    %624 = vmatprep.subr.bf16.mxu0 0
    %625 = vmatpush1.bf16.msra.mxu0 0
    %626 = vmatprep.subr.bf16.mxu0 0
    %627 = vmatpush1.bf16.msra.mxu0 0
    %628 = vmatprep.subr.bf16.mxu0 0
    %629 = vmatpush1.bf16.msra.mxu0 0
    %630 = vmatprep.subr.bf16.mxu0 %v512
    %631 = vmatpush1.bf16.msra.mxu0 %v511
    %632 = vmatprep.subr.bf16.mxu0 %v510
    %633 = vmatpush1.bf16.msra.mxu0 %v509
    %634 = vmatprep.subr.bf16.mxu0 0
    %635 = vmatpush2.bf16.msra.mxu0 0
    %636 = vmatprep.subr.bf16.mxu0 0
    %637 = vmatpush2.bf16.msra.mxu0 0
    %638 = vmatprep.subr.bf16.mxu0 0
    %639 = vmatpush2.bf16.msra.mxu0 0
    %640 = vmatprep.subr.bf16.mxu0 0
    %641 = vmatpush2.bf16.msra.mxu0 0
    %642 = vmatprep.subr.bf16.mxu0 0
    %643 = vmatpush2.bf16.msra.mxu0 0
    %644 = vmatprep.subr.bf16.mxu0 0
    %645 = vmatpush2.bf16.msra.mxu0 0
    %646 = vmatprep.subr.bf16.mxu0 0
    %647 = vmatpush2.bf16.msra.mxu0 0
    %648 = vmatprep.subr.bf16.mxu0 0
    %649 = vmatpush2.bf16.msra.mxu0 0
    %650 = vmatprep.mubr.bf16.mxu0 0
    %651 = vmatmul.mubr.bf16.gmra.mxu0 %v616
    %v652 = vpop.f32.mrf.mxu0
    %v653 = vadd.f32 0.0, %v652
    %v654 = vpop.f32.mrf.mxu0
    %v655 = vadd.f32 0.0, %v654
    %v656 = vpop.f32.mrf.mxu0
    %v657 = vpop.f32.mrf.mxu0
    %658 = vdwg.mxu0
    %v659 = vadd.f32 %v446, %v653
    %v660 = vadd.f32 %v447, %v655
    %v661 = vxor.u32 %v659, 2147483648
    %v662 = vxor.u32 %v660, 2147483648
    %v663 = vmul.f32 %v661, 1.442695
    %v664 = vpow.pop %v663
    %v665 = vmul.f32 %v662, 1.442695
    %v666 = vpow.pop %v665
    %v667 = vadd.f32 %v664, 1.0
    %v668 = vadd.f32 %v666, 1.0
    %v669 = vrcp.pop %v667
    %v670 = vmul.f32 1.0, %v669
    %v671 = vrcp.pop %v668
    %v672 = vmul.f32 1.0, %v671
    %v673 = vtanh.pop %v659
    %v674 = vtanh.pop %v660
    %676 = vrot.lane.b32.xlu0 %v670, 96
    %v677 = vpop.permute.xlu0 %676
    %v679 = vadd.f32 %v670, %v677
    %681 = vrot.lane.b32.xlu0 %v673, 64
    %v682 = vpop.permute.xlu0 %681
    %v684 = vmul.f32 %v679, %v682
    %v685 = vtanh.pop %v684
    %687 = vrot.lane.b32.xlu0 %v685, 96
    %v688 = vpop.permute.xlu0 %687
    %v690 = vmul.f32 %v670, %v688
    %692 = vrot.lane.b32.xlu0 %v672, 96
    %v693 = vpop.permute.xlu0 %692
    %v695 = vadd.f32 %v672, %v693
    %697 = vrot.lane.b32.xlu0 %v674, 64
    %v698 = vpop.permute.xlu0 %697
    %v700 = vmul.f32 %v695, %v698
    %v701 = vtanh.pop %v700
    %703 = vrot.lane.b32.xlu0 %v701, 96
    %v704 = vpop.permute.xlu0 %703
    %v706 = vmul.f32 %v672, %v704
    %v707 = vsel %vm437, %v690, %v706
    %v708 = vpack.c.bf16 %v707, %v707
    %710 = vrot.lane.b32.xlu0 %v708, 32
    %v711 = vpop.permute.xlu0 %710
    %v713 = vsel %vm517, %v711, 0
    %715 = vmatprep.subr.bf16.mxu0 0
    %716 = vmatpush1.bf16.msra.mxu0 0
    %717 = vmatprep.subr.bf16.mxu0 0
    %718 = vmatpush1.bf16.msra.mxu0 0
    %719 = vmatprep.subr.bf16.mxu0 0
    %720 = vmatpush1.bf16.msra.mxu0 0
    %721 = vmatprep.subr.bf16.mxu0 0
    %722 = vmatpush1.bf16.msra.mxu0 0
    %723 = vmatprep.subr.bf16.mxu0 0
    %724 = vmatpush1.bf16.msra.mxu0 0
    %725 = vmatprep.subr.bf16.mxu0 0
    %726 = vmatpush1.bf16.msra.mxu0 0
    %727 = vmatprep.subr.bf16.mxu0 %v512
    %728 = vmatpush1.bf16.msra.mxu0 %v511
    %729 = vmatprep.subr.bf16.mxu0 %v510
    %730 = vmatpush1.bf16.msra.mxu0 %v509
    %731 = vmatprep.subr.bf16.mxu0 0
    %732 = vmatpush2.bf16.msra.mxu0 0
    %733 = vmatprep.subr.bf16.mxu0 0
    %734 = vmatpush2.bf16.msra.mxu0 0
    %735 = vmatprep.subr.bf16.mxu0 0
    %736 = vmatpush2.bf16.msra.mxu0 0
    %737 = vmatprep.subr.bf16.mxu0 0
    %738 = vmatpush2.bf16.msra.mxu0 0
    %739 = vmatprep.subr.bf16.mxu0 0
    %740 = vmatpush2.bf16.msra.mxu0 0
    %741 = vmatprep.subr.bf16.mxu0 0
    %742 = vmatpush2.bf16.msra.mxu0 0
    %743 = vmatprep.subr.bf16.mxu0 0
    %744 = vmatpush2.bf16.msra.mxu0 0
    %745 = vmatprep.subr.bf16.mxu0 0
    %746 = vmatpush2.bf16.msra.mxu0 0
    %747 = vmatprep.mubr.bf16.mxu0 0
    %748 = vmatmul.mubr.bf16.gmra.mxu0 %v713
    %v749 = vpop.f32.mrf.mxu0
    %v750 = vadd.f32 0.0, %v749
    %v751 = vpop.f32.mrf.mxu0
    %v752 = vadd.f32 0.0, %v751
    %v753 = vpop.f32.mrf.mxu0
    %v754 = vpop.f32.mrf.mxu0
    %755 = vdwg.mxu0
    %v756 = vadd.f32 %v454, %v750
    %v757 = vadd.f32 %v455, %v752
    %v758 = vxor.u32 %v756, 2147483648
    %v759 = vxor.u32 %v757, 2147483648
    %v760 = vmul.f32 %v758, 1.442695
    %v761 = vpow.pop %v760
    %v762 = vmul.f32 %v759, 1.442695
    %v763 = vpow.pop %v762
    %v764 = vadd.f32 %v761, 1.0
    %v765 = vadd.f32 %v763, 1.0
    %v766 = vrcp.pop %v764
    %v767 = vmul.f32 1.0, %v766
    %v768 = vrcp.pop %v765
    %v769 = vmul.f32 1.0, %v768
    %v770 = vtanh.pop %v756
    %v771 = vtanh.pop %v757
    %773 = vrot.lane.b32.xlu0 %v767, 96
    %v774 = vpop.permute.xlu0 %773
    %v776 = vadd.f32 %v767, %v774
    %778 = vrot.lane.b32.xlu0 %v770, 64
    %v779 = vpop.permute.xlu0 %778
    %v781 = vmul.f32 %v776, %v779
    %v782 = vtanh.pop %v781
    %784 = vrot.lane.b32.xlu0 %v782, 96
    %v785 = vpop.permute.xlu0 %784
    %v787 = vmul.f32 %v767, %v785
    %789 = vrot.lane.b32.xlu0 %v769, 96
    %v790 = vpop.permute.xlu0 %789
    %v792 = vadd.f32 %v769, %v790
    %794 = vrot.lane.b32.xlu0 %v771, 64
    %v795 = vpop.permute.xlu0 %794
    %v797 = vmul.f32 %v792, %v795
    %v798 = vtanh.pop %v797
    %800 = vrot.lane.b32.xlu0 %v798, 96
    %v801 = vpop.permute.xlu0 %800
    %v803 = vmul.f32 %v769, %v801
    %v804 = vsel %vm437, %v787, %v803
    %v805 = vpack.c.bf16 %v804, %v804
    %807 = vrot.lane.b32.xlu0 %v805, 32
    %v808 = vpop.permute.xlu0 %807
    %v810 = vsel %vm517, %v808, 0
    %812 = vmatprep.subr.bf16.mxu0 0
    %813 = vmatpush1.bf16.msra.mxu0 0
    %814 = vmatprep.subr.bf16.mxu0 0
    %815 = vmatpush1.bf16.msra.mxu0 0
    %816 = vmatprep.subr.bf16.mxu0 0
    %817 = vmatpush1.bf16.msra.mxu0 0
    %818 = vmatprep.subr.bf16.mxu0 0
    %819 = vmatpush1.bf16.msra.mxu0 0
    %820 = vmatprep.subr.bf16.mxu0 0
    %821 = vmatpush1.bf16.msra.mxu0 0
    %822 = vmatprep.subr.bf16.mxu0 0
    %823 = vmatpush1.bf16.msra.mxu0 0
    %824 = vmatprep.subr.bf16.mxu0 %v512
    %825 = vmatpush1.bf16.msra.mxu0 %v511
    %826 = vmatprep.subr.bf16.mxu0 %v510
    %827 = vmatpush1.bf16.msra.mxu0 %v509
    %828 = vmatprep.subr.bf16.mxu0 0
    %829 = vmatpush2.bf16.msra.mxu0 0
    %830 = vmatprep.subr.bf16.mxu0 0
    %831 = vmatpush2.bf16.msra.mxu0 0
    %832 = vmatprep.subr.bf16.mxu0 0
    %833 = vmatpush2.bf16.msra.mxu0 0
    %834 = vmatprep.subr.bf16.mxu0 0
    %835 = vmatpush2.bf16.msra.mxu0 0
    %836 = vmatprep.subr.bf16.mxu0 0
    %837 = vmatpush2.bf16.msra.mxu0 0
    %838 = vmatprep.subr.bf16.mxu0 0
    %839 = vmatpush2.bf16.msra.mxu0 0
    %840 = vmatprep.subr.bf16.mxu0 0
    %841 = vmatpush2.bf16.msra.mxu0 0
    %842 = vmatprep.subr.bf16.mxu0 0
    %843 = vmatpush2.bf16.msra.mxu0 0
    %844 = vmatprep.mubr.bf16.mxu0 0
    %845 = vmatmul.mubr.bf16.gmra.mxu0 %v810
    %v846 = vpop.f32.mrf.mxu0
    %v847 = vadd.f32 0.0, %v846
    %v848 = vpop.f32.mrf.mxu0
    %v849 = vadd.f32 0.0, %v848
    %v850 = vpop.f32.mrf.mxu0
    %v851 = vpop.f32.mrf.mxu0
    %852 = vdwg.mxu0
    %v853 = vadd.f32 %v462, %v847
    %v854 = vadd.f32 %v463, %v849
    %v855 = vxor.u32 %v853, 2147483648
    %v856 = vxor.u32 %v854, 2147483648
    %v857 = vmul.f32 %v855, 1.442695
    %v858 = vpow.pop %v857
    %v859 = vmul.f32 %v856, 1.442695
    %v860 = vpow.pop %v859
    %v861 = vadd.f32 %v858, 1.0
    %v862 = vadd.f32 %v860, 1.0
    %v863 = vrcp.pop %v861
    %v864 = vmul.f32 1.0, %v863
    %v865 = vrcp.pop %v862
    %v866 = vmul.f32 1.0, %v865
    %v867 = vtanh.pop %v853
    %v868 = vtanh.pop %v854
    %870 = vrot.lane.b32.xlu0 %v864, 96
    %v871 = vpop.permute.xlu0 %870
    %v873 = vadd.f32 %v864, %v871
    %875 = vrot.lane.b32.xlu0 %v867, 64
    %v876 = vpop.permute.xlu0 %875
    %v878 = vmul.f32 %v873, %v876
    %v879 = vtanh.pop %v878
    %881 = vrot.lane.b32.xlu0 %v879, 96
    %v882 = vpop.permute.xlu0 %881
    %v884 = vmul.f32 %v864, %v882
    %886 = vrot.lane.b32.xlu0 %v866, 96
    %v887 = vpop.permute.xlu0 %886
    %v889 = vadd.f32 %v866, %v887
    %891 = vrot.lane.b32.xlu0 %v868, 64
    %v892 = vpop.permute.xlu0 %891
    %v894 = vmul.f32 %v889, %v892
    %v895 = vtanh.pop %v894
    %897 = vrot.lane.b32.xlu0 %v895, 96
    %v898 = vpop.permute.xlu0 %897
    %v900 = vmul.f32 %v866, %v898
    %v901 = vsel %vm437, %v884, %v900
    %v902 = vpack.c.bf16 %v901, %v901
    %904 = vrot.lane.b32.xlu0 %v902, 32
    %v905 = vpop.permute.xlu0 %904
    %v907 = vsel %vm517, %v905, 0
    %909 = vmatprep.subr.bf16.mxu0 0
    %910 = vmatpush1.bf16.msra.mxu0 0
    %911 = vmatprep.subr.bf16.mxu0 0
    %912 = vmatpush1.bf16.msra.mxu0 0
    %913 = vmatprep.subr.bf16.mxu0 0
    %914 = vmatpush1.bf16.msra.mxu0 0
    %915 = vmatprep.subr.bf16.mxu0 0
    %916 = vmatpush1.bf16.msra.mxu0 0
    %917 = vmatprep.subr.bf16.mxu0 0
    %918 = vmatpush1.bf16.msra.mxu0 0
    %919 = vmatprep.subr.bf16.mxu0 0
    %920 = vmatpush1.bf16.msra.mxu0 0
    %921 = vmatprep.subr.bf16.mxu0 %v512
    %922 = vmatpush1.bf16.msra.mxu0 %v511
    %923 = vmatprep.subr.bf16.mxu0 %v510
    %924 = vmatpush1.bf16.msra.mxu0 %v509
    %925 = vmatprep.subr.bf16.mxu0 0
    %926 = vmatpush2.bf16.msra.mxu0 0
    %927 = vmatprep.subr.bf16.mxu0 0
    %928 = vmatpush2.bf16.msra.mxu0 0
    %929 = vmatprep.subr.bf16.mxu0 0
    %930 = vmatpush2.bf16.msra.mxu0 0
    %931 = vmatprep.subr.bf16.mxu0 0
    %932 = vmatpush2.bf16.msra.mxu0 0
    %933 = vmatprep.subr.bf16.mxu0 0
    %934 = vmatpush2.bf16.msra.mxu0 0
    %935 = vmatprep.subr.bf16.mxu0 0
    %936 = vmatpush2.bf16.msra.mxu0 0
    %937 = vmatprep.subr.bf16.mxu0 0
    %938 = vmatpush2.bf16.msra.mxu0 0
    %939 = vmatprep.subr.bf16.mxu0 0
    %940 = vmatpush2.bf16.msra.mxu0 0
    %941 = vmatprep.mubr.bf16.mxu0 0
    %942 = vmatmul.mubr.bf16.gmra.mxu0 %v907
    %v943 = vpop.f32.mrf.mxu0
    %v944 = vadd.f32 0.0, %v943
    %v945 = vpop.f32.mrf.mxu0
    %v946 = vadd.f32 0.0, %v945
    %v947 = vpop.f32.mrf.mxu0
    %v948 = vpop.f32.mrf.mxu0
    %949 = vdwg.mxu0
    %v950 = vadd.f32 %v470, %v944
    %v951 = vadd.f32 %v471, %v946
    %v952 = vxor.u32 %v950, 2147483648
    %v953 = vxor.u32 %v951, 2147483648
    %v954 = vmul.f32 %v952, 1.442695
    %v955 = vpow.pop %v954
    %v956 = vmul.f32 %v953, 1.442695
    %v957 = vpow.pop %v956
    %v958 = vadd.f32 %v955, 1.0
    %v959 = vadd.f32 %v957, 1.0
    %v960 = vrcp.pop %v958
    %v961 = vmul.f32 1.0, %v960
    %v962 = vrcp.pop %v959
    %v963 = vmul.f32 1.0, %v962
    %v964 = vtanh.pop %v950
    %v965 = vtanh.pop %v951
    %967 = vrot.lane.b32.xlu0 %v961, 96
    %v968 = vpop.permute.xlu0 %967
    %v970 = vadd.f32 %v961, %v968
    %972 = vrot.lane.b32.xlu0 %v964, 64
    %v973 = vpop.permute.xlu0 %972
    %v975 = vmul.f32 %v970, %v973
    %v976 = vtanh.pop %v975
    %978 = vrot.lane.b32.xlu0 %v976, 96
    %v979 = vpop.permute.xlu0 %978
    %v981 = vmul.f32 %v961, %v979
    %983 = vrot.lane.b32.xlu0 %v963, 96
    %v984 = vpop.permute.xlu0 %983
    %v986 = vadd.f32 %v963, %v984
    %988 = vrot.lane.b32.xlu0 %v965, 64
    %v989 = vpop.permute.xlu0 %988
    %v991 = vmul.f32 %v986, %v989
    %v992 = vtanh.pop %v991
    %994 = vrot.lane.b32.xlu0 %v992, 96
    %v995 = vpop.permute.xlu0 %994
    %v997 = vmul.f32 %v963, %v995
    %v999 = vrot.slane %v900, 2
    %v1001 = vmul.f32 %v981, %v999
    %v1002 = vtanh.pop %v1001
    %v1004 = vrot.slane %v997, 2
    %v1006 = vmul.f32 %v884, %v1004
    %v1007 = vtanh.pop %v1006
    %v1008 = vmax.f32 %v1002, %v1007
    %v1009 = vsel %vm437, %v981, %v997
    %v1010 = vpack.c.bf16 %v1009, %v1009
    %1012 = vrot.lane.b32.xlu0 %v1010, 32
    %v1013 = vpop.permute.xlu0 %1012
    %v1015 = vsel %vm517, %v1013, 0
    %1017 = vmatprep.subr.bf16.mxu0 0
    %1018 = vmatpush1.bf16.msra.mxu0 0
    %1019 = vmatprep.subr.bf16.mxu0 0
    %1020 = vmatpush1.bf16.msra.mxu0 0
    %1021 = vmatprep.subr.bf16.mxu0 0
    %1022 = vmatpush1.bf16.msra.mxu0 0
    %1023 = vmatprep.subr.bf16.mxu0 0
    %1024 = vmatpush1.bf16.msra.mxu0 0
    %1025 = vmatprep.subr.bf16.mxu0 0
    %1026 = vmatpush1.bf16.msra.mxu0 0
    %1027 = vmatprep.subr.bf16.mxu0 0
    %1028 = vmatpush1.bf16.msra.mxu0 0
    %1029 = vmatprep.subr.bf16.mxu0 %v512
    %1030 = vmatpush1.bf16.msra.mxu0 %v511
    %1031 = vmatprep.subr.bf16.mxu0 %v510
    %1032 = vmatpush1.bf16.msra.mxu0 %v509
    %1033 = vmatprep.subr.bf16.mxu0 0
    %1034 = vmatpush2.bf16.msra.mxu0 0
    %1035 = vmatprep.subr.bf16.mxu0 0
    %1036 = vmatpush2.bf16.msra.mxu0 0
    %1037 = vmatprep.subr.bf16.mxu0 0
    %1038 = vmatpush2.bf16.msra.mxu0 0
    %1039 = vmatprep.subr.bf16.mxu0 0
    %1040 = vmatpush2.bf16.msra.mxu0 0
    %1041 = vmatprep.subr.bf16.mxu0 0
    %1042 = vmatpush2.bf16.msra.mxu0 0
    %1043 = vmatprep.subr.bf16.mxu0 0
    %1044 = vmatpush2.bf16.msra.mxu0 0
    %1045 = vmatprep.subr.bf16.mxu0 0
    %1046 = vmatpush2.bf16.msra.mxu0 0
    %1047 = vmatprep.subr.bf16.mxu0 0
    %1048 = vmatpush2.bf16.msra.mxu0 0
    %1049 = vmatprep.mubr.bf16.mxu0 0
    %1050 = vmatmul.mubr.bf16.gmra.mxu0 %v1015
    %v1051 = vpop.f32.mrf.mxu0
    %v1052 = vadd.f32 0.0, %v1051
    %v1053 = vpop.f32.mrf.mxu0
    %v1054 = vadd.f32 0.0, %v1053
    %v1055 = vpop.f32.mrf.mxu0
    %v1056 = vpop.f32.mrf.mxu0
    %1057 = vdwg.mxu0
    %v1058 = vadd.f32 %v478, %v1052
    %v1059 = vadd.f32 %v479, %v1054
    %v1060 = vxor.u32 %v1058, 2147483648
    %v1061 = vxor.u32 %v1059, 2147483648
    %v1062 = vmul.f32 %v1060, 1.442695
    %v1063 = vpow.pop %v1062
    %v1064 = vmul.f32 %v1061, 1.442695
    %v1065 = vpow.pop %v1064
    %v1066 = vadd.f32 %v1063, 1.0
    %v1067 = vadd.f32 %v1065, 1.0
    %v1068 = vrcp.pop %v1066
    %v1069 = vmul.f32 1.0, %v1068
    %v1070 = vrcp.pop %v1067
    %v1071 = vmul.f32 1.0, %v1070
    %v1072 = vtanh.pop %v1058
    %v1073 = vtanh.pop %v1059
    %1075 = vrot.lane.b32.xlu0 %v1069, 96
    %v1076 = vpop.permute.xlu0 %1075
    %v1078 = vadd.f32 %v1069, %v1076
    %1080 = vrot.lane.b32.xlu0 %v1072, 64
    %v1081 = vpop.permute.xlu0 %1080
    %v1083 = vmul.f32 %v1078, %v1081
    %v1084 = vtanh.pop %v1083
    %1086 = vrot.lane.b32.xlu0 %v1084, 96
    %v1087 = vpop.permute.xlu0 %1086
    %v1089 = vmul.f32 %v1069, %v1087
    %1091 = vrot.lane.b32.xlu0 %v1071, 96
    %v1092 = vpop.permute.xlu0 %1091
    %v1094 = vadd.f32 %v1071, %v1092
    %1096 = vrot.lane.b32.xlu0 %v1073, 64
    %v1097 = vpop.permute.xlu0 %1096
    %v1099 = vmul.f32 %v1094, %v1097
    %v1100 = vtanh.pop %v1099
    %1102 = vrot.lane.b32.xlu0 %v1100, 96
    %v1103 = vpop.permute.xlu0 %1102
    %v1105 = vmul.f32 %v1071, %v1103
    %v1107 = vrot.slane %v803, 2
    %v1109 = vmul.f32 %v1089, %v1107
    %v1110 = vtanh.pop %v1109
    %v1111 = vmax.f32 %v1008, %v1110
    %v1113 = vrot.slane %v1105, 2
    %v1115 = vmul.f32 %v787, %v1113
    %v1116 = vtanh.pop %v1115
    %v1117 = vmax.f32 %v1111, %v1116
    %v1118 = vsel %vm437, %v1089, %v1105
    %v1119 = vpack.c.bf16 %v1118, %v1118
    %1121 = vrot.lane.b32.xlu0 %v1119, 32
    %v1122 = vpop.permute.xlu0 %1121
    %v1124 = vsel %vm517, %v1122, 0
    %1126 = vmatprep.subr.bf16.mxu0 0
    %1127 = vmatpush1.bf16.msra.mxu0 0
    %1128 = vmatprep.subr.bf16.mxu0 0
    %1129 = vmatpush1.bf16.msra.mxu0 0
    %1130 = vmatprep.subr.bf16.mxu0 0
    %1131 = vmatpush1.bf16.msra.mxu0 0
    %1132 = vmatprep.subr.bf16.mxu0 0
    %1133 = vmatpush1.bf16.msra.mxu0 0
    %1134 = vmatprep.subr.bf16.mxu0 0
    %1135 = vmatpush1.bf16.msra.mxu0 0
    %1136 = vmatprep.subr.bf16.mxu0 0
    %1137 = vmatpush1.bf16.msra.mxu0 0
    %1138 = vmatprep.subr.bf16.mxu0 %v512
    %1139 = vmatpush1.bf16.msra.mxu0 %v511
    %1140 = vmatprep.subr.bf16.mxu0 %v510
    %1141 = vmatpush1.bf16.msra.mxu0 %v509
    %1142 = vmatprep.subr.bf16.mxu0 0
    %1143 = vmatpush2.bf16.msra.mxu0 0
    %1144 = vmatprep.subr.bf16.mxu0 0
    %1145 = vmatpush2.bf16.msra.mxu0 0
    %1146 = vmatprep.subr.bf16.mxu0 0
    %1147 = vmatpush2.bf16.msra.mxu0 0
    %1148 = vmatprep.subr.bf16.mxu0 0
    %1149 = vmatpush2.bf16.msra.mxu0 0
    %1150 = vmatprep.subr.bf16.mxu0 0
    %1151 = vmatpush2.bf16.msra.mxu0 0
    %1152 = vmatprep.subr.bf16.mxu0 0
    %1153 = vmatpush2.bf16.msra.mxu0 0
    %1154 = vmatprep.subr.bf16.mxu0 0
    %1155 = vmatpush2.bf16.msra.mxu0 0
    %1156 = vmatprep.subr.bf16.mxu0 0
    %1157 = vmatpush2.bf16.msra.mxu0 0
    %1158 = vmatprep.mubr.bf16.mxu0 0
    %1159 = vmatmul.mubr.bf16.gmra.mxu0 %v1124
    %v1160 = vpop.f32.mrf.mxu0
    %v1161 = vadd.f32 0.0, %v1160
    %v1162 = vpop.f32.mrf.mxu0
    %v1163 = vadd.f32 0.0, %v1162
    %v1164 = vpop.f32.mrf.mxu0
    %v1165 = vpop.f32.mrf.mxu0
    %1166 = vdwg.mxu0
    %v1167 = vadd.f32 %v486, %v1161
    %v1168 = vadd.f32 %v487, %v1163
    %v1169 = vxor.u32 %v1167, 2147483648
    %v1170 = vxor.u32 %v1168, 2147483648
    %v1171 = vmul.f32 %v1169, 1.442695
    %v1172 = vpow.pop %v1171
    %v1173 = vmul.f32 %v1170, 1.442695
    %v1174 = vpow.pop %v1173
    %v1175 = vadd.f32 %v1172, 1.0
    %v1176 = vadd.f32 %v1174, 1.0
    %v1177 = vrcp.pop %v1175
    %v1178 = vmul.f32 1.0, %v1177
    %v1179 = vrcp.pop %v1176
    %v1180 = vmul.f32 1.0, %v1179
    %v1181 = vtanh.pop %v1167
    %v1182 = vtanh.pop %v1168
    %1184 = vrot.lane.b32.xlu0 %v1178, 96
    %v1185 = vpop.permute.xlu0 %1184
    %v1187 = vadd.f32 %v1178, %v1185
    %1189 = vrot.lane.b32.xlu0 %v1181, 64
    %v1190 = vpop.permute.xlu0 %1189
    %v1192 = vmul.f32 %v1187, %v1190
    %v1193 = vtanh.pop %v1192
    %1195 = vrot.lane.b32.xlu0 %v1193, 96
    %v1196 = vpop.permute.xlu0 %1195
    %v1198 = vmul.f32 %v1178, %v1196
    %1200 = vrot.lane.b32.xlu0 %v1180, 96
    %v1201 = vpop.permute.xlu0 %1200
    %v1203 = vadd.f32 %v1180, %v1201
    %1205 = vrot.lane.b32.xlu0 %v1182, 64
    %v1206 = vpop.permute.xlu0 %1205
    %v1208 = vmul.f32 %v1203, %v1206
    %v1209 = vtanh.pop %v1208
    %1211 = vrot.lane.b32.xlu0 %v1209, 96
    %v1212 = vpop.permute.xlu0 %1211
    %v1214 = vmul.f32 %v1180, %v1212
    %v1216 = vrot.slane %v706, 2
    %v1218 = vmul.f32 %v1198, %v1216
    %v1219 = vtanh.pop %v1218
    %v1220 = vmax.f32 %v1117, %v1219
    %v1222 = vrot.slane %v1214, 2
    %v1224 = vmul.f32 %v690, %v1222
    %v1225 = vtanh.pop %v1224
    %v1226 = vmax.f32 %v1220, %v1225
    %v1227 = vsel %vm437, %v1198, %v1214
    %v1228 = vpack.c.bf16 %v1227, %v1227
    %1230 = vrot.lane.b32.xlu0 %v1228, 32
    %v1231 = vpop.permute.xlu0 %1230
    %v1233 = vsel %vm517, %v1231, 0
    %1235 = vmatprep.subr.bf16.mxu0 0
    %1236 = vmatpush1.bf16.msra.mxu0 0
    %1237 = vmatprep.subr.bf16.mxu0 0
    %1238 = vmatpush1.bf16.msra.mxu0 0
    %1239 = vmatprep.subr.bf16.mxu0 0
    %1240 = vmatpush1.bf16.msra.mxu0 0
    %1241 = vmatprep.subr.bf16.mxu0 0
    %1242 = vmatpush1.bf16.msra.mxu0 0
    %1243 = vmatprep.subr.bf16.mxu0 0
    %1244 = vmatpush1.bf16.msra.mxu0 0
    %1245 = vmatprep.subr.bf16.mxu0 0
    %1246 = vmatpush1.bf16.msra.mxu0 0
    %1247 = vmatprep.subr.bf16.mxu0 %v512
    %1248 = vmatpush1.bf16.msra.mxu0 %v511
    %1249 = vmatprep.subr.bf16.mxu0 %v510
    %1250 = vmatpush1.bf16.msra.mxu0 %v509
    %1251 = vmatprep.subr.bf16.mxu0 0
    %1252 = vmatpush2.bf16.msra.mxu0 0
    %1253 = vmatprep.subr.bf16.mxu0 0
    %1254 = vmatpush2.bf16.msra.mxu0 0
    %1255 = vmatprep.subr.bf16.mxu0 0
    %1256 = vmatpush2.bf16.msra.mxu0 0
    %1257 = vmatprep.subr.bf16.mxu0 0
    %1258 = vmatpush2.bf16.msra.mxu0 0
    %1259 = vmatprep.subr.bf16.mxu0 0
    %1260 = vmatpush2.bf16.msra.mxu0 0
    %1261 = vmatprep.subr.bf16.mxu0 0
    %1262 = vmatpush2.bf16.msra.mxu0 0
    %1263 = vmatprep.subr.bf16.mxu0 0
    %1264 = vmatpush2.bf16.msra.mxu0 0
    %1265 = vmatprep.subr.bf16.mxu0 0
    %1266 = vmatpush2.bf16.msra.mxu0 0
    %1267 = vmatprep.mubr.bf16.mxu0 0
    %1268 = vmatmul.mubr.bf16.gmra.mxu0 %v1233
    %v1269 = vpop.f32.mrf.mxu0
    %v1270 = vadd.f32 0.0, %v1269
    %v1271 = vpop.f32.mrf.mxu0
    %v1272 = vadd.f32 0.0, %v1271
    %v1273 = vpop.f32.mrf.mxu0
    %v1274 = vpop.f32.mrf.mxu0
    %1275 = vdwg.mxu0
    %v1276 = vadd.f32 %v494, %v1270
    %v1277 = vadd.f32 %v495, %v1272
    %v1278 = vxor.u32 %v1276, 2147483648
    %v1279 = vxor.u32 %v1277, 2147483648
    %v1280 = vmul.f32 %v1278, 1.442695
    %v1281 = vpow.pop %v1280
    %v1282 = vmul.f32 %v1279, 1.442695
    %v1283 = vpow.pop %v1282
    %v1284 = vadd.f32 %v1281, 1.0
    %v1285 = vadd.f32 %v1283, 1.0
    %v1286 = vrcp.pop %v1284
    %v1287 = vmul.f32 1.0, %v1286
    %v1288 = vrcp.pop %v1285
    %v1289 = vmul.f32 1.0, %v1288
    %v1290 = vtanh.pop %v1276
    %v1291 = vtanh.pop %v1277
    %1293 = vrot.lane.b32.xlu0 %v1287, 96
    %v1294 = vpop.permute.xlu0 %1293
    %v1296 = vadd.f32 %v1287, %v1294
    %1298 = vrot.lane.b32.xlu0 %v1290, 64
    %v1299 = vpop.permute.xlu0 %1298
    %v1301 = vmul.f32 %v1296, %v1299
    %v1302 = vtanh.pop %v1301
    %1304 = vrot.lane.b32.xlu0 %v1302, 96
    %v1305 = vpop.permute.xlu0 %1304
    %v1307 = vmul.f32 %v1287, %v1305
    %1309 = vrot.lane.b32.xlu0 %v1289, 96
    %v1310 = vpop.permute.xlu0 %1309
    %v1312 = vadd.f32 %v1289, %v1310
    %1314 = vrot.lane.b32.xlu0 %v1291, 64
    %v1315 = vpop.permute.xlu0 %1314
    %v1317 = vmul.f32 %v1312, %v1315
    %v1318 = vtanh.pop %v1317
    %1320 = vrot.lane.b32.xlu0 %v1318, 96
    %v1321 = vpop.permute.xlu0 %1320
    %v1323 = vmul.f32 %v1289, %v1321
    %v1325 = vrot.slane %v609, 2
    %v1327 = vmul.f32 %v1307, %v1325
    %v1328 = vtanh.pop %v1327
    %v1329 = vmax.f32 %v1226, %v1328
    %v1331 = vrot.slane %v1323, 2
    %v1333 = vmul.f32 %v593, %v1331
    %v1334 = vtanh.pop %v1333
    %v1335 = vmax.f32 %v1329, %v1334
    %v1336 = vld [vmem:[#allocation9] sm:$0xff]
    %v1337 = vld [vmem:[#allocation9 + $0x8] sm:$0xff]
    %v1338 = vld [vmem:[#allocation9 + $0x10] sm:$0xff]
    %v1339 = vld [vmem:[#allocation9 + $0x18] sm:$0xff]
    %v1340 = vld [vmem:[%s4] sm:$0x1]
    %v1342 = vlaneseq
    %v1343 = vshrl.u32 %v1342, 7
    %v1344 = vsub.s32 0, %v1343
    %v1345 = vrot.slane %v1340, %v1344
    %1348 = vrot.lane.b32.xlu0 %v1335, 32
    %v1349 = vpop.permute.xlu0 %1348
    %v1350 = vsel %vm517, %v1349, 0
    %1352 = vmatprep.subr.mxu0 0.0
    %1353 = vmatpush1.msra.mxu0 0.0
    %1354 = vmatprep.subr.mxu0 0.0
    %1355 = vmatpush1.msra.mxu0 0.0
    %1356 = vmatprep.subr.mxu0 0.0
    %1357 = vmatpush1.msra.mxu0 0.0
    %1358 = vmatprep.subr.mxu0 0.0
    %1359 = vmatpush1.msra.mxu0 0.0
    %1360 = vmatprep.subr.mxu0 0.0
    %1361 = vmatpush1.msra.mxu0 0.0
    %1362 = vmatprep.subr.mxu0 0.0
    %1363 = vmatpush1.msra.mxu0 0.0
    %1364 = vmatprep.subr.mxu0 0.0
    %1365 = vmatpush1.msra.mxu0 0.0
    %1366 = vmatprep.subr.mxu0 0.0
    %1367 = vmatpush1.msra.mxu0 0.0
    %1368 = vmatprep.subr.mxu0 0.0
    %1369 = vmatpush1.msra.mxu0 0.0
    %1370 = vmatprep.subr.mxu0 0.0
    %1371 = vmatpush1.msra.mxu0 0.0
    %1372 = vmatprep.subr.mxu0 0.0
    %1373 = vmatpush1.msra.mxu0 0.0
    %1374 = vmatprep.subr.mxu0 0.0
    %1375 = vmatpush1.msra.mxu0 0.0
    %1376 = vmatprep.subr.mxu0 0.0
    %1377 = vmatpush1.msra.mxu0 %v1339
    %1378 = vmatprep.subr.mxu0 0.0
    %1379 = vmatpush1.msra.mxu0 %v1338
    %1380 = vmatprep.subr.mxu0 0.0
    %1381 = vmatpush1.msra.mxu0 %v1337
    %1382 = vmatprep.subr.mxu0 0.0
    %1383 = vmatpush1.msra.mxu0 %v1336
    %1384 = vmatprep.subr.mxu0 0.0
    %1385 = vmatpush2.msra.mxu0 0.0
    %1386 = vmatprep.subr.mxu0 0.0
    %1387 = vmatpush2.msra.mxu0 0.0
    %1388 = vmatprep.subr.mxu0 0.0
    %1389 = vmatpush2.msra.mxu0 0.0
    %1390 = vmatprep.subr.mxu0 0.0
    %1391 = vmatpush2.msra.mxu0 0.0
    %1392 = vmatprep.subr.mxu0 0.0
    %1393 = vmatpush2.msra.mxu0 0.0
    %1394 = vmatprep.subr.mxu0 0.0
    %1395 = vmatpush2.msra.mxu0 0.0
    %1396 = vmatprep.subr.mxu0 0.0
    %1397 = vmatpush2.msra.mxu0 0.0
    %1398 = vmatprep.subr.mxu0 0.0
    %1399 = vmatpush2.msra.mxu0 0.0
    %1400 = vmatprep.subr.mxu0 0.0
    %1401 = vmatpush2.msra.mxu0 0.0
    %1402 = vmatprep.subr.mxu0 0.0
    %1403 = vmatpush2.msra.mxu0 0.0
    %1404 = vmatprep.subr.mxu0 0.0
    %1405 = vmatpush2.msra.mxu0 0.0
    %1406 = vmatprep.subr.mxu0 0.0
    %1407 = vmatpush2.msra.mxu0 0.0
    %1408 = vmatprep.subr.mxu0 0.0
    %1409 = vmatpush2.msra.mxu0 0.0
    %1410 = vmatprep.subr.mxu0 0.0
    %1411 = vmatpush2.msra.mxu0 0.0
    %1412 = vmatprep.subr.mxu0 0.0
    %1413 = vmatpush2.msra.mxu0 0.0
    %1414 = vmatprep.subr.mxu0 0.0
    %1415 = vmatpush2.msra.mxu0 0.0
    %1416 = vmatprep.mubr.f32.mxu0 0.0
    %1417 = vmatmul.mubr.f32.gmra.mxu0 %v1350
    %v1418 = vpop.f32.mrf.mxu0
    %v1419 = vadd.f32 %v1345, %v1418
    %v1420 = vpop.f32.mrf.mxu0
    %1421 = vdwg.mxu0
    %1422 = vst [vmem:[#allocation10] sm:$0x3] %v1419
    // Predicated region
    $region38: #{bilstm_forward.1} parent=1 // pred_check
      _
    $region39: #{bilstm_forward.1} parent=1 // pred_check_branch
      %1424 = sbr.rel (0) target = $region41
    $region40: #{bilstm_forward.1} parent=1 // pred_region
      %s1426 = ssub.s32 32, 32
      %1427 = vsyncadd [#allocation4], %s1426
      %s1429 = sshll.u32 [#allocation10], 4
      %s1430 = int_to_ptr.vmem [resolvable:$true] %s1429
      %1432 = dma.vmem_to_hbm [thread:$0]  %s1430, 32, %s5, [#allocation4]
    $region41: #{bilstm_forward.1} parent=1 // pred_fallthru
      _
    // Predicated region
    $region42: #{bilstm_forward.1} parent=1 // pred_check
      _
    $region43: #{bilstm_forward.1} parent=1 // pred_check_branch
      %1434 = sbr.rel (0) target = $region45
    $region44: #{bilstm_forward.1} parent=1 // pred_region
      %1435 = dma.done [#allocation4], 32
    $region45: #{bilstm_forward.1} parent=1 // pred_fallthru
      _
    %1436 = vsyncpa [#allocation3], 1
    %1437 = vsyncpa [#allocation8], 1
    %1438 = vsyncpa [#allocation4], 1
    %1439 = vsyncpa [#allocation5], 1

</llo_original>
